<compile_context>
chip_gen: v6e
topology: v6e:2x2x1
jax: 0.10.0
libtpu: 0.0.40
codegen_flags: <defaults>
</compile_context>

<pallas_src>
import numpy as np
import jax
import jax.numpy as jnp
from jax import lax
from jax.experimental import pallas as pl
from jax.experimental.pallas import tpu as pltpu

BATCH = 4
N_NODES = 16
IN_FEATS = 32
NUM_HEADS = 2
LEAKY_ALPHA = 0.2
BN_EPS = 1e-5
NEG_BIG = -1e30


def alpha_gnn_kernel(adj_ref, x_ref, w_gat_ref, al_ref, ar_ref,
                     w_gcn_ref, b_gcn_ref, w_res_ref, b_res_ref,
                     gamma_ref, beta_ref, out_ref):
    Bt, N, F = x_ref.shape
    H = NUM_HEADS

    # ---- stacked dense projections (one MXU push for all Bt graphs) ----------
    x = x_ref[...].reshape(Bt * N, F)                                   # fold leading dims
    z = jnp.dot(x, w_gat_ref[...], preferred_element_type=jnp.float32)  # [Bt*N, H*F]

    # All-head attention logits via block-diagonal attn rows (single matmuls).
    # el_all[h, n] = <attn_l[h], z[n, hF:(h+1)F]>   (lane-dense over nodes)
    # er_all[n, h] = <attn_r[h], z[n, hF:(h+1)F]>   (nodes on sublanes -> column)
    el_all = lax.dot_general(al_ref[...], z, (((1,), (1,)), ((), ())),
                             preferred_element_type=jnp.float32)        # [H, Bt*N]
    er_all = lax.dot_general(z, ar_ref[...], (((1,), (1,)), ((), ())),
                             preferred_element_type=jnp.float32)        # [Bt*N, H]

    # ---- GAT attention + aggregation, per graph (static Python loops) --------
    gat_blocks = []
    for b in range(Bt):
        A = adj_ref[b]                                  # [N, N] float {0,1}, A[dst, src]
        heads = []
        for h in range(H):
            z_h = z[b * N:(b + 1) * N, h * F:(h + 1) * F]               # [N, F]
            el = el_all[h:h + 1, b * N:(b + 1) * N]                     # [1, N] (src)
            er = er_all[b * N:(b + 1) * N, h:h + 1]                     # [N, 1] (dst)
            e = er + el                                                 # [N, N] VPU add
            e = jnp.maximum(e, LEAKY_ALPHA * e)                         # leaky relu
            # Mask non-edges before the row-max so exp can neither overflow
            # (non-edge logit >> edge logits) nor underflow every edge entry.
            e = jnp.where(A > 0, e, NEG_BIG)
            p = jnp.exp(e - jnp.max(e, axis=1, keepdims=True))          # 0 at non-edges
            row_sum = jnp.sum(p, axis=1, keepdims=True)                 # [N, 1]
            head_out = jnp.dot(p, z_h, preferred_element_type=jnp.float32)
            # Deferred softmax normalization: exact EUP reciprocal on [N,1].
            heads.append(head_out * pl.reciprocal(row_sum))
        # agg_mode='flatten' + GATLayer ReLU; stays register-resident (64 lanes).
        gat_blocks.append(jnp.maximum(jnp.concatenate(heads, axis=1), 0.0))
    gat = jnp.concatenate(gat_blocks, axis=0)                           # [Bt*N, H*F]

    # ---- GCN dense projections, stacked over the Bt graphs -------------------
    hw = jnp.dot(gat, w_gcn_ref[...], preferred_element_type=jnp.float32)   # [Bt*N, F]
    res = jnp.maximum(
        jnp.dot(gat, w_res_ref[...], preferred_element_type=jnp.float32)
        + b_res_ref[...], 0.0)                                              # residual ReLU

    # ---- per-graph graph-conv aggregation + BatchNorm -------------------------
    for b in range(Bt):
        A = adj_ref[b]
        d_in = jnp.maximum(jnp.sum(A, axis=1, keepdims=True), 1.0)      # [N, 1] in-deg(dst)
        d_out = jnp.maximum(jnp.sum(A, axis=0, keepdims=True), 1.0)     # [1, N] out-deg(src)
        a_hat = lax.rsqrt(d_in) * A * lax.rsqrt(d_out)                  # D_in^-1/2 A D_out^-1/2
        hw_b = hw[b * N:(b + 1) * N, :]
        rst = jnp.maximum(
            jnp.dot(a_hat, hw_b, preferred_element_type=jnp.float32)
            + b_gcn_ref[...], 0.0)                                      # GraphConv + ReLU
        nf = rst + res[b * N:(b + 1) * N, :]                            # dropout p=0 -> identity

        # BatchNorm1d (module default = training mode -> per-graph batch stats,
        # biased variance).  Running buffers are not modeled.
        mean = jnp.mean(nf, axis=0, keepdims=True)
        var = jnp.mean((nf - mean) ** 2, axis=0, keepdims=True)
        normed = (nf - mean) * lax.rsqrt(var + BN_EPS)
        out_ref[b] = normed * gamma_ref[...] + beta_ref[...]


def alpha_gnn_layer(adj, feats, prm):
    """adj: [B, N, N] dense 0/1 adjacency (adj[b, d, s]=1 iff edge s->d),
       feats: [B, N, F]."""
    B, N, _ = adj.shape
    F = feats.shape[2]
    H = NUM_HEADS
    HF = H * F

    # 2 grid steps (when possible) keeps both v7x TensorCores busy while
    # amortizing the ~0.35 us per-step overhead; v5e/v6e just loop twice.
    steps = 2 if (B >= 2 and B % 2 == 0) else 1
    Bt = B // steps

    def resident(shape):   # full-array block, same index every step -> stays in VMEM
        return pl.BlockSpec(shape, lambda b, _s=shape: (0,) * len(_s))

    grid_spec = pltpu.PrefetchScalarGridSpec(
        num_scalar_prefetch=0,
        grid=(steps,),
        in_specs=[
            pl.BlockSpec((Bt, N, N), lambda b: (b, 0, 0)),     # adjacency slab
            pl.BlockSpec((Bt, N, F), lambda b: (b, 0, 0)),     # node features slab
            resident((F, HF)),                                 # w_gat
            resident((H, HF)),                                 # attn_l (block-diag rows)
            resident((H, HF)),                                 # attn_r (block-diag rows)
            resident((HF, F)),                                 # w_gcn
            resident((1, F)),                                  # b_gcn
            resident((HF, F)),                                 # w_res
            resident((1, F)),                                  # b_res
            resident((1, F)),                                  # bn gamma
            resident((1, F)),                                  # bn beta
        ],
        out_specs=pl.BlockSpec((Bt, N, F), lambda b: (b, 0, 0)),
    )

    # Advisory cost estimate so XLA can schedule around the custom call.
    flops_per_graph = (
        2 * N * F * HF              # x @ Wgat
        + 2 * H * HF * N            # src logits
        + 2 * HF * H * N            # dst logits
        + H * (8 * N * N + 2 * N * N * F + 4 * N * F)  # softmax + aggregation
        + 2 * N * HF * F            # gat @ Wgcn
        + 2 * N * N * F             # a_hat @ hw
        + 2 * N * HF * F            # residual linear
        + 20 * N * F)               # relu / add / batchnorm
    trans_per_graph = H * (N * N + N) + 2 * N + F       # exp, reciprocal, rsqrt
    bytes_per_graph = 4 * (N * N + 2 * N * F)
    bytes_weights = 4 * (F * HF + 2 * H * HF + 2 * HF * F + 4 * F)

    call = pl.pallas_call(
        alpha_gnn_kernel,
        out_shape=jax.ShapeDtypeStruct((B, N, F), jnp.float32),
        grid_spec=grid_spec,
        compiler_params=pltpu.CompilerParams(
            dimension_semantics=("parallel",)),
        cost_estimate=pl.CostEstimate(
            flops=B * flops_per_graph,
            transcendentals=B * trans_per_graph,
            bytes_accessed=B * bytes_per_graph + bytes_weights),
    )
    return call(adj, feats,
                prm["w_gat"], prm["al_rows"], prm["ar_rows"],
                prm["w_gcn"], prm["b_gcn"], prm["w_res"], prm["b_res"],
                prm["gamma"], prm["beta"])


def make_params(key):
    F, H = IN_FEATS, NUM_HEADS
    ks = jax.random.split(key, 6)
    w_gat = jax.random.normal(ks[0], (F, H * F), jnp.float32) / np.sqrt(F)
    attn_l = jax.random.normal(ks[1], (H, F), jnp.float32) * 0.1
    attn_r = jax.random.normal(ks[2], (H, F), jnp.float32) * 0.1
    # Block-diagonal row layout so all-head logits are single matmuls in-kernel.
    al_rows = jnp.zeros((H, H * F), jnp.float32)
    ar_rows = jnp.zeros((H, H * F), jnp.float32)
    for h in range(H):
        al_rows = al_rows.at[h, h * F:(h + 1) * F].set(attn_l[h])
        ar_rows = ar_rows.at[h, h * F:(h + 1) * F].set(attn_r[h])
    w_gcn = jax.random.normal(ks[3], (H * F, F), jnp.float32) / np.sqrt(H * F)
    b_gcn = jnp.zeros((1, F), jnp.float32)
    w_res = jax.random.normal(ks[4], (H * F, F), jnp.float32) / np.sqrt(H * F)
    b_res = jax.random.normal(ks[5], (1, F), jnp.float32) * 0.01
    gamma = jnp.ones((1, F), jnp.float32)
    beta = jnp.zeros((1, F), jnp.float32)
    return dict(w_gat=w_gat, attn_l=attn_l, attn_r=attn_r,
                al_rows=al_rows, ar_rows=ar_rows,
                w_gcn=w_gcn, b_gcn=b_gcn, w_res=w_res, b_res=b_res,
                gamma=gamma, beta=beta)


def reference_single(adj, x, prm):
    """Pure-JAX reference of the same forward pass for one graph."""
    H, F = NUM_HEADS, IN_FEATS
    N = x.shape[0]
    z = x @ prm["w_gat"]
    z3 = z.reshape(N, H, F)
    el = jnp.einsum("nhf,hf->nh", z3, prm["attn_l"])
    er = jnp.einsum("nhf,hf->nh", z3, prm["attn_r"])
    e = el[None, :, :] + er[:, None, :]                 # [dst, src, h]
    e = jnp.where(e > 0, e, LEAKY_ALPHA * e)
    mask = adj[:, :, None] > 0
    e = jnp.where(mask, e, -jnp.inf)
    att = jax.nn.softmax(e, axis=1)
    att = jnp.where(mask, att, 0.0)
    gat = jax.nn.relu(jnp.einsum("dsh,shf->dhf", att, z3).reshape(N, H * F))
    d_in = jnp.maximum(adj.sum(1), 1.0)[:, None]
    d_out = jnp.maximum(adj.sum(0), 1.0)[None, :]
    a_hat = adj / jnp.sqrt(d_in) / jnp.sqrt(d_out)
    rst = jax.nn.relu(a_hat @ (gat @ prm["w_gcn"]) + prm["b_gcn"])
    res = jax.nn.relu(gat @ prm["w_res"] + prm["b_res"])
    nf = rst + res
    mean = nf.mean(0, keepdims=True)
    var = ((nf - mean) ** 2).mean(0, keepdims=True)
    return (nf - mean) / jnp.sqrt(var + BN_EPS) * prm["gamma"] + prm["beta"]


if __name__ == "__main__":
    key = jax.random.PRNGKey(0)
    k_adj, k_x, k_p = jax.random.split(key, 3)

    B, N = BATCH, N_NODES
    # deterministic graphs: self-loops + ring + random extra edges
    # (in-degree >= 1 everywhere, matching allow_zero_in_degree=False)
    idx = jnp.arange(N)
    base = (jnp.zeros((N, N), jnp.float32)
            .at[idx, idx].set(1.0)               # self-loops
            .at[(idx + 1) % N, idx].set(1.0))    # edges i -> i+1
    extra = jax.random.bernoulli(k_adj, 0.2, (B, N, N)).astype(jnp.float32)
    adj = jnp.maximum(base[None, :, :], extra)

    feats = jax.random.normal(k_x, (B, N, IN_FEATS), jnp.float32)
    params = make_params(k_p)

    out = jax.block_until_ready(alpha_gnn_layer(adj, feats, params))
    ref = jax.block_until_ready(
        jax.vmap(reference_single, in_axes=(0, 0, None))(adj, feats, params))

    np.testing.assert_allclose(np.asarray(out), np.asarray(ref), rtol=5e-3, atol=5e-3)

    # TODO(synk): dropout layers are identity here (p=0.0 module defaults);
    # BatchNorm1d uses training-mode batch statistics (running buffers are not
    # updated/modeled, so eval-mode outputs would differ).
    print("KERNEL_OK")
</pallas_src>

<mosaic_0001>
module attributes {stable_mosaic.version = 11 : i64} {
  func.func @alpha_gnn_kernel(%arg0: i32, %arg1: memref<2x16x16xf32, #tpu.memory_space<vmem>>, %arg2: memref<2x16x32xf32, #tpu.memory_space<vmem>>, %arg3: memref<32x64xf32, #tpu.memory_space<vmem>>, %arg4: memref<2x64xf32, #tpu.memory_space<vmem>>, %arg5: memref<2x64xf32, #tpu.memory_space<vmem>>, %arg6: memref<64x32xf32, #tpu.memory_space<vmem>>, %arg7: memref<1x32xf32, #tpu.memory_space<vmem>>, %arg8: memref<64x32xf32, #tpu.memory_space<vmem>>, %arg9: memref<1x32xf32, #tpu.memory_space<vmem>>, %arg10: memref<1x32xf32, #tpu.memory_space<vmem>>, %arg11: memref<1x32xf32, #tpu.memory_space<vmem>>, %arg12: memref<2x16x32xf32, #tpu.memory_space<vmem>>) attributes {dimension_semantics = [#tpu.dimension_semantics<parallel>], iteration_bounds = array<i64: 2>, scalar_prefetch = 0 : i64, scratch_operands = 0 : i64, tpu.core_type = #tpu.core_type<tc>, window_params = [{transform_indices = @transform_0, window_bounds = array<i64: 2, 16, 16>}, {transform_indices = @transform_1, window_bounds = array<i64: 2, 16, 32>}, {pipeline_mode = #tpu.pipeline_mode<synchronous>, transform_indices = @transform_2, window_bounds = array<i64: 32, 64>}, {pipeline_mode = #tpu.pipeline_mode<synchronous>, transform_indices = @transform_3, window_bounds = array<i64: 2, 64>}, {pipeline_mode = #tpu.pipeline_mode<synchronous>, transform_indices = @transform_4, window_bounds = array<i64: 2, 64>}, {pipeline_mode = #tpu.pipeline_mode<synchronous>, transform_indices = @transform_5, window_bounds = array<i64: 64, 32>}, {pipeline_mode = #tpu.pipeline_mode<synchronous>, transform_indices = @transform_6, window_bounds = array<i64: 1, 32>}, {pipeline_mode = #tpu.pipeline_mode<synchronous>, transform_indices = @transform_7, window_bounds = array<i64: 64, 32>}, {pipeline_mode = #tpu.pipeline_mode<synchronous>, transform_indices = @transform_8, window_bounds = array<i64: 1, 32>}, {pipeline_mode = #tpu.pipeline_mode<synchronous>, transform_indices = @transform_9, window_bounds = array<i64: 1, 32>}, {pipeline_mode = #tpu.pipeline_mode<synchronous>, transform_indices = @transform_10, window_bounds = array<i64: 1, 32>}, {transform_indices = @transform_11, window_bounds = array<i64: 2, 16, 32>}]} {
    %c0 = arith.constant 0 : index
    %c0_0 = arith.constant 0 : index
    %c0_1 = arith.constant 0 : index
    %0 = vector.load %arg2[%c0, %c0_0, %c0_1] : memref<2x16x32xf32, #tpu.memory_space<vmem>>, vector<2x16x32xf32>
    %1 = vector.shape_cast %0 : vector<2x16x32xf32> to vector<32x32xf32>
    %c0_2 = arith.constant 0 : index
    %c0_3 = arith.constant 0 : index
    %2 = vector.load %arg3[%c0_2, %c0_3] : memref<32x64xf32, #tpu.memory_space<vmem>>, vector<32x64xf32>
    %cst = arith.constant dense<0.000000e+00> : vector<32x64xf32>
    %3 = tpu.matmul %1, %2, %cst {dimension_numbers = #tpu.dot_dimension_numbers<[1], [0], [0], [1], [0, 0, 1, 1], [], []>} : vector<32x32xf32>, vector<32x64xf32>, vector<32x64xf32> -> vector<32x64xf32>
    %c0_4 = arith.constant 0 : index
    %c0_5 = arith.constant 0 : index
    %4 = vector.load %arg4[%c0_4, %c0_5] : memref<2x64xf32, #tpu.memory_space<vmem>>, vector<2x64xf32>
    %cst_6 = arith.constant dense<0.000000e+00> : vector<2x32xf32>
    %5 = tpu.matmul %4, %3, %cst_6 {dimension_numbers = #tpu.dot_dimension_numbers<[1], [1], [0], [0], [0, 0, 1, 0], [], []>} : vector<2x64xf32>, vector<32x64xf32>, vector<2x32xf32> -> vector<2x32xf32>
    %c0_7 = arith.constant 0 : index
    %c0_8 = arith.constant 0 : index
    %6 = vector.load %arg5[%c0_7, %c0_8] : memref<2x64xf32, #tpu.memory_space<vmem>>, vector<2x64xf32>
    %cst_9 = arith.constant dense<0.000000e+00> : vector<32x2xf32>
    %7 = tpu.matmul %3, %6, %cst_9 {dimension_numbers = #tpu.dot_dimension_numbers<[1], [1], [0], [0], [0, 0, 1, 0], [], []>} : vector<32x64xf32>, vector<2x64xf32>, vector<32x2xf32> -> vector<32x2xf32>
    %c0_10 = arith.constant 0 : index
    %c0_11 = arith.constant 0 : index
    %c0_12 = arith.constant 0 : index
    %8 = vector.load %arg1[%c0_10, %c0_11, %c0_12] : memref<2x16x16xf32, #tpu.memory_space<vmem>>, vector<1x16x16xf32>
    %9 = vector.shape_cast %8 : vector<1x16x16xf32> to vector<16x16xf32>
    %10 = vector.extract_strided_slice %3 {offsets = [0, 0], sizes = [16, 32], strides = [1, 1]} : vector<32x64xf32> to vector<16x32xf32>
    %11 = vector.extract_strided_slice %5 {offsets = [0, 0], sizes = [1, 16], strides = [1, 1]} : vector<2x32xf32> to vector<1x16xf32>
    %12 = vector.extract_strided_slice %7 {offsets = [0, 0], sizes = [16, 1], strides = [1, 1]} : vector<32x2xf32> to vector<16x1xf32>
    %13 = vector.broadcast %12 : vector<16x1xf32> to vector<16x16xf32>
    %14 = vector.broadcast %11 : vector<1x16xf32> to vector<16x16xf32>
    %15 = arith.addf %13, %14 : vector<16x16xf32>
    %cst_13 = arith.constant 2.000000e-01 : f32
    %16 = vector.broadcast %cst_13 : f32 to vector<16x16xf32>
    %17 = arith.mulf %16, %15 : vector<16x16xf32>
    %18 = arith.maximumf %15, %17 : vector<16x16xf32>
    %cst_14 = arith.constant 0.000000e+00 : f32
    %19 = vector.broadcast %cst_14 : f32 to vector<16x16xf32>
    %20 = arith.cmpf ogt, %9, %19 : vector<16x16xf32>
    %cst_15 = arith.constant -1.000000e+30 : f32
    %21 = vector.broadcast %cst_15 : f32 to vector<16x16xf32>
    %22 = arith.select %20, %18, %21 : vector<16x16xi1>, vector<16x16xf32>
    %cst_16 = arith.constant dense<0xFF800000> : vector<16xf32>
    %23 = vector.multi_reduction <maximumf>, %22, %cst_16 [1] : vector<16x16xf32> to vector<16xf32>
    %24 = vector.shape_cast %23 : vector<16xf32> to vector<16x1xf32>
    %25 = vector.broadcast %24 : vector<16x1xf32> to vector<16x16xf32>
    %26 = arith.subf %22, %25 : vector<16x16xf32>
    %27 = math.exp %26 : vector<16x16xf32>
    %cst_17 = arith.constant dense<0.000000e+00> : vector<16xf32>
    %28 = vector.multi_reduction <add>, %27, %cst_17 [1] : vector<16x16xf32> to vector<16xf32>
    %29 = vector.shape_cast %28 : vector<16xf32> to vector<16x1xf32>
    %cst_18 = arith.constant dense<0.000000e+00> : vector<16x32xf32>
    %30 = tpu.matmul %27, %10, %cst_18 {dimension_numbers = #tpu.dot_dimension_numbers<[1], [0], [0], [1], [0, 0, 1, 1], [], []>} : vector<16x16xf32>, vector<16x32xf32>, vector<16x32xf32> -> vector<16x32xf32>
    %31 = tpu.reciprocal %29 : vector<16x1xf32> -> vector<16x1xf32>
    %32 = vector.broadcast %31 : vector<16x1xf32> to vector<16x32xf32>
    %33 = arith.mulf %30, %32 : vector<16x32xf32>
    %34 = vector.extract_strided_slice %3 {offsets = [0, 32], sizes = [16, 32], strides = [1, 1]} : vector<32x64xf32> to vector<16x32xf32>
    %35 = vector.extract_strided_slice %5 {offsets = [1, 0], sizes = [1, 16], strides = [1, 1]} : vector<2x32xf32> to vector<1x16xf32>
    %36 = vector.extract_strided_slice %7 {offsets = [0, 1], sizes = [16, 1], strides = [1, 1]} : vector<32x2xf32> to vector<16x1xf32>
    %37 = vector.broadcast %36 : vector<16x1xf32> to vector<16x16xf32>
    %38 = vector.broadcast %35 : vector<1x16xf32> to vector<16x16xf32>
    %39 = arith.addf %37, %38 : vector<16x16xf32>
    %cst_19 = arith.constant 2.000000e-01 : f32
    %40 = vector.broadcast %cst_19 : f32 to vector<16x16xf32>
    %41 = arith.mulf %40, %39 : vector<16x16xf32>
    %42 = arith.maximumf %39, %41 : vector<16x16xf32>
    %cst_20 = arith.constant 0.000000e+00 : f32
    %43 = vector.broadcast %cst_20 : f32 to vector<16x16xf32>
    %44 = arith.cmpf ogt, %9, %43 : vector<16x16xf32>
    %cst_21 = arith.constant -1.000000e+30 : f32
    %45 = vector.broadcast %cst_21 : f32 to vector<16x16xf32>
    %46 = arith.select %44, %42, %45 : vector<16x16xi1>, vector<16x16xf32>
    %cst_22 = arith.constant dense<0xFF800000> : vector<16xf32>
    %47 = vector.multi_reduction <maximumf>, %46, %cst_22 [1] : vector<16x16xf32> to vector<16xf32>
    %48 = vector.shape_cast %47 : vector<16xf32> to vector<16x1xf32>
    %49 = vector.broadcast %48 : vector<16x1xf32> to vector<16x16xf32>
    %50 = arith.subf %46, %49 : vector<16x16xf32>
    %51 = math.exp %50 : vector<16x16xf32>
    %cst_23 = arith.constant dense<0.000000e+00> : vector<16xf32>
    %52 = vector.multi_reduction <add>, %51, %cst_23 [1] : vector<16x16xf32> to vector<16xf32>
    %53 = vector.shape_cast %52 : vector<16xf32> to vector<16x1xf32>
    %cst_24 = arith.constant dense<0.000000e+00> : vector<16x32xf32>
    %54 = tpu.matmul %51, %34, %cst_24 {dimension_numbers = #tpu.dot_dimension_numbers<[1], [0], [0], [1], [0, 0, 1, 1], [], []>} : vector<16x16xf32>, vector<16x32xf32>, vector<16x32xf32> -> vector<16x32xf32>
    %55 = tpu.reciprocal %53 : vector<16x1xf32> -> vector<16x1xf32>
    %56 = vector.broadcast %55 : vector<16x1xf32> to vector<16x32xf32>
    %57 = arith.mulf %54, %56 : vector<16x32xf32>
    %58 = tpu.concatenate %33, %57 in 1 : vector<16x32xf32>, vector<16x32xf32> -> vector<16x64xf32>
    %cst_25 = arith.constant 0.000000e+00 : f32
    %59 = vector.broadcast %cst_25 : f32 to vector<16x64xf32>
    %60 = arith.maximumf %58, %59 : vector<16x64xf32>
    %c1 = arith.constant 1 : index
    %c0_26 = arith.constant 0 : index
    %c0_27 = arith.constant 0 : index
    %61 = vector.load %arg1[%c1, %c0_26, %c0_27] : memref<2x16x16xf32, #tpu.memory_space<vmem>>, vector<1x16x16xf32>
    %62 = vector.shape_cast %61 : vector<1x16x16xf32> to vector<16x16xf32>
    %63 = vector.extract_strided_slice %3 {offsets = [16, 0], sizes = [16, 32], strides = [1, 1]} : vector<32x64xf32> to vector<16x32xf32>
    %64 = vector.extract_strided_slice %5 {offsets = [0, 16], sizes = [1, 16], strides = [1, 1]} : vector<2x32xf32> to vector<1x16xf32>
    %65 = vector.extract_strided_slice %7 {offsets = [16, 0], sizes = [16, 1], strides = [1, 1]} : vector<32x2xf32> to vector<16x1xf32>
    %66 = vector.broadcast %65 : vector<16x1xf32> to vector<16x16xf32>
    %67 = vector.broadcast %64 : vector<1x16xf32> to vector<16x16xf32>
    %68 = arith.addf %66, %67 : vector<16x16xf32>
    %cst_28 = arith.constant 2.000000e-01 : f32
    %69 = vector.broadcast %cst_28 : f32 to vector<16x16xf32>
    %70 = arith.mulf %69, %68 : vector<16x16xf32>
    %71 = arith.maximumf %68, %70 : vector<16x16xf32>
    %cst_29 = arith.constant 0.000000e+00 : f32
    %72 = vector.broadcast %cst_29 : f32 to vector<16x16xf32>
    %73 = arith.cmpf ogt, %62, %72 : vector<16x16xf32>
    %cst_30 = arith.constant -1.000000e+30 : f32
    %74 = vector.broadcast %cst_30 : f32 to vector<16x16xf32>
    %75 = arith.select %73, %71, %74 : vector<16x16xi1>, vector<16x16xf32>
    %cst_31 = arith.constant dense<0xFF800000> : vector<16xf32>
    %76 = vector.multi_reduction <maximumf>, %75, %cst_31 [1] : vector<16x16xf32> to vector<16xf32>
    %77 = vector.shape_cast %76 : vector<16xf32> to vector<16x1xf32>
    %78 = vector.broadcast %77 : vector<16x1xf32> to vector<16x16xf32>
    %79 = arith.subf %75, %78 : vector<16x16xf32>
    %80 = math.exp %79 : vector<16x16xf32>
    %cst_32 = arith.constant dense<0.000000e+00> : vector<16xf32>
    %81 = vector.multi_reduction <add>, %80, %cst_32 [1] : vector<16x16xf32> to vector<16xf32>
    %82 = vector.shape_cast %81 : vector<16xf32> to vector<16x1xf32>
    %cst_33 = arith.constant dense<0.000000e+00> : vector<16x32xf32>
    %83 = tpu.matmul %80, %63, %cst_33 {dimension_numbers = #tpu.dot_dimension_numbers<[1], [0], [0], [1], [0, 0, 1, 1], [], []>} : vector<16x16xf32>, vector<16x32xf32>, vector<16x32xf32> -> vector<16x32xf32>
    %84 = tpu.reciprocal %82 : vector<16x1xf32> -> vector<16x1xf32>
    %85 = vector.broadcast %84 : vector<16x1xf32> to vector<16x32xf32>
    %86 = arith.mulf %83, %85 : vector<16x32xf32>
    %87 = vector.extract_strided_slice %3 {offsets = [16, 32], sizes = [16, 32], strides = [1, 1]} : vector<32x64xf32> to vector<16x32xf32>
    %88 = vector.extract_strided_slice %5 {offsets = [1, 16], sizes = [1, 16], strides = [1, 1]} : vector<2x32xf32> to vector<1x16xf32>
    %89 = vector.extract_strided_slice %7 {offsets = [16, 1], sizes = [16, 1], strides = [1, 1]} : vector<32x2xf32> to vector<16x1xf32>
    %90 = vector.broadcast %89 : vector<16x1xf32> to vector<16x16xf32>
    %91 = vector.broadcast %88 : vector<1x16xf32> to vector<16x16xf32>
    %92 = arith.addf %90, %91 : vector<16x16xf32>
    %cst_34 = arith.constant 2.000000e-01 : f32
    %93 = vector.broadcast %cst_34 : f32 to vector<16x16xf32>
    %94 = arith.mulf %93, %92 : vector<16x16xf32>
    %95 = arith.maximumf %92, %94 : vector<16x16xf32>
    %cst_35 = arith.constant 0.000000e+00 : f32
    %96 = vector.broadcast %cst_35 : f32 to vector<16x16xf32>
    %97 = arith.cmpf ogt, %62, %96 : vector<16x16xf32>
    %cst_36 = arith.constant -1.000000e+30 : f32
    %98 = vector.broadcast %cst_36 : f32 to vector<16x16xf32>
    %99 = arith.select %97, %95, %98 : vector<16x16xi1>, vector<16x16xf32>
    %cst_37 = arith.constant dense<0xFF800000> : vector<16xf32>
    %100 = vector.multi_reduction <maximumf>, %99, %cst_37 [1] : vector<16x16xf32> to vector<16xf32>
    %101 = vector.shape_cast %100 : vector<16xf32> to vector<16x1xf32>
    %102 = vector.broadcast %101 : vector<16x1xf32> to vector<16x16xf32>
    %103 = arith.subf %99, %102 : vector<16x16xf32>
    %104 = math.exp %103 : vector<16x16xf32>
    %cst_38 = arith.constant dense<0.000000e+00> : vector<16xf32>
    %105 = vector.multi_reduction <add>, %104, %cst_38 [1] : vector<16x16xf32> to vector<16xf32>
    %106 = vector.shape_cast %105 : vector<16xf32> to vector<16x1xf32>
    %cst_39 = arith.constant dense<0.000000e+00> : vector<16x32xf32>
    %107 = tpu.matmul %104, %87, %cst_39 {dimension_numbers = #tpu.dot_dimension_numbers<[1], [0], [0], [1], [0, 0, 1, 1], [], []>} : vector<16x16xf32>, vector<16x32xf32>, vector<16x32xf32> -> vector<16x32xf32>
    %108 = tpu.reciprocal %106 : vector<16x1xf32> -> vector<16x1xf32>
    %109 = vector.broadcast %108 : vector<16x1xf32> to vector<16x32xf32>
    %110 = arith.mulf %107, %109 : vector<16x32xf32>
    %111 = tpu.concatenate %86, %110 in 1 : vector<16x32xf32>, vector<16x32xf32> -> vector<16x64xf32>
    %cst_40 = arith.constant 0.000000e+00 : f32
    %112 = vector.broadcast %cst_40 : f32 to vector<16x64xf32>
    %113 = arith.maximumf %111, %112 : vector<16x64xf32>
    %114 = tpu.concatenate %60, %113 in 0 : vector<16x64xf32>, vector<16x64xf32> -> vector<32x64xf32>
    %c0_41 = arith.constant 0 : index
    %c0_42 = arith.constant 0 : index
    %115 = vector.load %arg6[%c0_41, %c0_42] : memref<64x32xf32, #tpu.memory_space<vmem>>, vector<64x32xf32>
    %cst_43 = arith.constant dense<0.000000e+00> : vector<32x32xf32>
    %116 = tpu.matmul %114, %115, %cst_43 {dimension_numbers = #tpu.dot_dimension_numbers<[1], [0], [0], [1], [0, 0, 1, 1], [], []>} : vector<32x64xf32>, vector<64x32xf32>, vector<32x32xf32> -> vector<32x32xf32>
    %c0_44 = arith.constant 0 : index
    %c0_45 = arith.constant 0 : index
    %117 = vector.load %arg8[%c0_44, %c0_45] : memref<64x32xf32, #tpu.memory_space<vmem>>, vector<64x32xf32>
    %cst_46 = arith.constant dense<0.000000e+00> : vector<32x32xf32>
    %118 = tpu.matmul %114, %117, %cst_46 {dimension_numbers = #tpu.dot_dimension_numbers<[1], [0], [0], [1], [0, 0, 1, 1], [], []>} : vector<32x64xf32>, vector<64x32xf32>, vector<32x32xf32> -> vector<32x32xf32>
    %c0_47 = arith.constant 0 : index
    %c0_48 = arith.constant 0 : index
    %119 = vector.load %arg9[%c0_47, %c0_48] : memref<1x32xf32, #tpu.memory_space<vmem>>, vector<1x32xf32>
    %120 = vector.broadcast %119 : vector<1x32xf32> to vector<32x32xf32>
    %121 = arith.addf %118, %120 : vector<32x32xf32>
    %cst_49 = arith.constant 0.000000e+00 : f32
    %122 = vector.broadcast %cst_49 : f32 to vector<32x32xf32>
    %123 = arith.maximumf %121, %122 : vector<32x32xf32>
    %c0_50 = arith.constant 0 : index
    %c0_51 = arith.constant 0 : index
    %c0_52 = arith.constant 0 : index
    %124 = vector.load %arg1[%c0_50, %c0_51, %c0_52] : memref<2x16x16xf32, #tpu.memory_space<vmem>>, vector<1x16x16xf32>
    %125 = vector.shape_cast %124 : vector<1x16x16xf32> to vector<16x16xf32>
    %cst_53 = arith.constant dense<0.000000e+00> : vector<16xf32>
    %126 = vector.multi_reduction <add>, %125, %cst_53 [1] : vector<16x16xf32> to vector<16xf32>
    %127 = vector.shape_cast %126 : vector<16xf32> to vector<16x1xf32>
    %cst_54 = arith.constant 1.000000e+00 : f32
    %128 = vector.broadcast %cst_54 : f32 to vector<16x1xf32>
    %129 = arith.maximumf %127, %128 : vector<16x1xf32>
    %cst_55 = arith.constant dense<0.000000e+00> : vector<16xf32>
    %130 = vector.multi_reduction <add>, %125, %cst_55 [0] : vector<16x16xf32> to vector<16xf32>
    %131 = vector.shape_cast %130 : vector<16xf32> to vector<1x16xf32>
    %cst_56 = arith.constant 1.000000e+00 : f32
    %132 = vector.broadcast %cst_56 : f32 to vector<1x16xf32>
    %133 = arith.maximumf %131, %132 : vector<1x16xf32>
    %134 = math.rsqrt %129 : vector<16x1xf32>
    %135 = vector.broadcast %134 : vector<16x1xf32> to vector<16x16xf32>
    %136 = arith.mulf %135, %125 : vector<16x16xf32>
    %137 = math.rsqrt %133 : vector<1x16xf32>
    %138 = vector.broadcast %137 : vector<1x16xf32> to vector<16x16xf32>
    %139 = arith.mulf %136, %138 : vector<16x16xf32>
    %140 = vector.extract_strided_slice %116 {offsets = [0, 0], sizes = [16, 32], strides = [1, 1]} : vector<32x32xf32> to vector<16x32xf32>
    %cst_57 = arith.constant dense<0.000000e+00> : vector<16x32xf32>
    %141 = tpu.matmul %139, %140, %cst_57 {dimension_numbers = #tpu.dot_dimension_numbers<[1], [0], [0], [1], [0, 0, 1, 1], [], []>} : vector<16x16xf32>, vector<16x32xf32>, vector<16x32xf32> -> vector<16x32xf32>
    %c0_58 = arith.constant 0 : index
    %c0_59 = arith.constant 0 : index
    %142 = vector.load %arg7[%c0_58, %c0_59] : memref<1x32xf32, #tpu.memory_space<vmem>>, vector<1x32xf32>
    %143 = vector.broadcast %142 : vector<1x32xf32> to vector<16x32xf32>
    %144 = arith.addf %141, %143 : vector<16x32xf32>
    %cst_60 = arith.constant 0.000000e+00 : f32
    %145 = vector.broadcast %cst_60 : f32 to vector<16x32xf32>
    %146 = arith.maximumf %144, %145 : vector<16x32xf32>
    %147 = vector.extract_strided_slice %123 {offsets = [0, 0], sizes = [16, 32], strides = [1, 1]} : vector<32x32xf32> to vector<16x32xf32>
    %148 = arith.addf %146, %147 : vector<16x32xf32>
    %cst_61 = arith.constant dense<0.000000e+00> : vector<32xf32>
    %149 = vector.multi_reduction <add>, %148, %cst_61 [0] : vector<16x32xf32> to vector<32xf32>
    %150 = vector.shape_cast %149 : vector<32xf32> to vector<1x32xf32>
    %cst_62 = arith.constant 1.600000e+01 : f32
    %151 = vector.broadcast %cst_62 : f32 to vector<1x32xf32>
    %152 = arith.divf %150, %151 : vector<1x32xf32>
    %153 = vector.broadcast %152 : vector<1x32xf32> to vector<16x32xf32>
    %154 = arith.subf %148, %153 : vector<16x32xf32>
    %155 = arith.mulf %154, %154 : vector<16x32xf32>
    %cst_63 = arith.constant dense<0.000000e+00> : vector<32xf32>
    %156 = vector.multi_reduction <add>, %155, %cst_63 [0] : vector<16x32xf32> to vector<32xf32>
    %157 = vector.shape_cast %156 : vector<32xf32> to vector<1x32xf32>
    %cst_64 = arith.constant 1.600000e+01 : f32
    %158 = vector.broadcast %cst_64 : f32 to vector<1x32xf32>
    %159 = arith.divf %157, %158 : vector<1x32xf32>
    %160 = vector.broadcast %152 : vector<1x32xf32> to vector<16x32xf32>
    %161 = arith.subf %148, %160 : vector<16x32xf32>
    %cst_65 = arith.constant 9.99999974E-6 : f32
    %162 = vector.broadcast %cst_65 : f32 to vector<1x32xf32>
    %163 = arith.addf %159, %162 : vector<1x32xf32>
    %164 = math.rsqrt %163 : vector<1x32xf32>
    %165 = vector.broadcast %164 : vector<1x32xf32> to vector<16x32xf32>
    %166 = arith.mulf %161, %165 : vector<16x32xf32>
    %c0_66 = arith.constant 0 : index
    %c0_67 = arith.constant 0 : index
    %167 = vector.load %arg10[%c0_66, %c0_67] : memref<1x32xf32, #tpu.memory_space<vmem>>, vector<1x32xf32>
    %168 = vector.broadcast %167 : vector<1x32xf32> to vector<16x32xf32>
    %169 = arith.mulf %166, %168 : vector<16x32xf32>
    %c0_68 = arith.constant 0 : index
    %c0_69 = arith.constant 0 : index
    %170 = vector.load %arg11[%c0_68, %c0_69] : memref<1x32xf32, #tpu.memory_space<vmem>>, vector<1x32xf32>
    %171 = vector.broadcast %170 : vector<1x32xf32> to vector<16x32xf32>
    %172 = arith.addf %169, %171 : vector<16x32xf32>
    %c0_70 = arith.constant 0 : index
    %c0_71 = arith.constant 0 : index
    %c0_72 = arith.constant 0 : index
    %173 = vector.load %arg12[%c0_70, %c0_71, %c0_72] : memref<2x16x32xf32, #tpu.memory_space<vmem>>, vector<1x16x32xf32>
    %174 = vector.shape_cast %173 : vector<1x16x32xf32> to vector<16x32xf32>
    %175 = vector.shape_cast %172 : vector<16x32xf32> to vector<1x16x32xf32>
    tpu.vector_store %arg12[%c0_70, %c0_71, %c0_72], %175 {strides = array<i32>} : memref<2x16x32xf32, #tpu.memory_space<vmem>>, vector<1x16x32xf32>,
    %c1_73 = arith.constant 1 : index
    %c0_74 = arith.constant 0 : index
    %c0_75 = arith.constant 0 : index
    %176 = vector.load %arg1[%c1_73, %c0_74, %c0_75] : memref<2x16x16xf32, #tpu.memory_space<vmem>>, vector<1x16x16xf32>
    %177 = vector.shape_cast %176 : vector<1x16x16xf32> to vector<16x16xf32>
    %cst_76 = arith.constant dense<0.000000e+00> : vector<16xf32>
    %178 = vector.multi_reduction <add>, %177, %cst_76 [1] : vector<16x16xf32> to vector<16xf32>
    %179 = vector.shape_cast %178 : vector<16xf32> to vector<16x1xf32>
    %cst_77 = arith.constant 1.000000e+00 : f32
    %180 = vector.broadcast %cst_77 : f32 to vector<16x1xf32>
    %181 = arith.maximumf %179, %180 : vector<16x1xf32>
    %cst_78 = arith.constant dense<0.000000e+00> : vector<16xf32>
    %182 = vector.multi_reduction <add>, %177, %cst_78 [0] : vector<16x16xf32> to vector<16xf32>
    %183 = vector.shape_cast %182 : vector<16xf32> to vector<1x16xf32>
    %cst_79 = arith.constant 1.000000e+00 : f32
    %184 = vector.broadcast %cst_79 : f32 to vector<1x16xf32>
    %185 = arith.maximumf %183, %184 : vector<1x16xf32>
    %186 = math.rsqrt %181 : vector<16x1xf32>
    %187 = vector.broadcast %186 : vector<16x1xf32> to vector<16x16xf32>
    %188 = arith.mulf %187, %177 : vector<16x16xf32>
    %189 = math.rsqrt %185 : vector<1x16xf32>
    %190 = vector.broadcast %189 : vector<1x16xf32> to vector<16x16xf32>
    %191 = arith.mulf %188, %190 : vector<16x16xf32>
    %192 = vector.extract_strided_slice %116 {offsets = [16, 0], sizes = [16, 32], strides = [1, 1]} : vector<32x32xf32> to vector<16x32xf32>
    %cst_80 = arith.constant dense<0.000000e+00> : vector<16x32xf32>
    %193 = tpu.matmul %191, %192, %cst_80 {dimension_numbers = #tpu.dot_dimension_numbers<[1], [0], [0], [1], [0, 0, 1, 1], [], []>} : vector<16x16xf32>, vector<16x32xf32>, vector<16x32xf32> -> vector<16x32xf32>
    %c0_81 = arith.constant 0 : index
    %c0_82 = arith.constant 0 : index
    %194 = vector.load %arg7[%c0_81, %c0_82] : memref<1x32xf32, #tpu.memory_space<vmem>>, vector<1x32xf32>
    %195 = vector.broadcast %194 : vector<1x32xf32> to vector<16x32xf32>
    %196 = arith.addf %193, %195 : vector<16x32xf32>
    %cst_83 = arith.constant 0.000000e+00 : f32
    %197 = vector.broadcast %cst_83 : f32 to vector<16x32xf32>
    %198 = arith.maximumf %196, %197 : vector<16x32xf32>
    %199 = vector.extract_strided_slice %123 {offsets = [16, 0], sizes = [16, 32], strides = [1, 1]} : vector<32x32xf32> to vector<16x32xf32>
    %200 = arith.addf %198, %199 : vector<16x32xf32>
    %cst_84 = arith.constant dense<0.000000e+00> : vector<32xf32>
    %201 = vector.multi_reduction <add>, %200, %cst_84 [0] : vector<16x32xf32> to vector<32xf32>
    %202 = vector.shape_cast %201 : vector<32xf32> to vector<1x32xf32>
    %cst_85 = arith.constant 1.600000e+01 : f32
    %203 = vector.broadcast %cst_85 : f32 to vector<1x32xf32>
    %204 = arith.divf %202, %203 : vector<1x32xf32>
    %205 = vector.broadcast %204 : vector<1x32xf32> to vector<16x32xf32>
    %206 = arith.subf %200, %205 : vector<16x32xf32>
    %207 = arith.mulf %206, %206 : vector<16x32xf32>
    %cst_86 = arith.constant dense<0.000000e+00> : vector<32xf32>
    %208 = vector.multi_reduction <add>, %207, %cst_86 [0] : vector<16x32xf32> to vector<32xf32>
    %209 = vector.shape_cast %208 : vector<32xf32> to vector<1x32xf32>
    %cst_87 = arith.constant 1.600000e+01 : f32
    %210 = vector.broadcast %cst_87 : f32 to vector<1x32xf32>
    %211 = arith.divf %209, %210 : vector<1x32xf32>
    %212 = vector.broadcast %204 : vector<1x32xf32> to vector<16x32xf32>
    %213 = arith.subf %200, %212 : vector<16x32xf32>
    %cst_88 = arith.constant 9.99999974E-6 : f32
    %214 = vector.broadcast %cst_88 : f32 to vector<1x32xf32>
    %215 = arith.addf %211, %214 : vector<1x32xf32>
    %216 = math.rsqrt %215 : vector<1x32xf32>
    %217 = vector.broadcast %216 : vector<1x32xf32> to vector<16x32xf32>
    %218 = arith.mulf %213, %217 : vector<16x32xf32>
    %c0_89 = arith.constant 0 : index
    %c0_90 = arith.constant 0 : index
    %219 = vector.load %arg10[%c0_89, %c0_90] : memref<1x32xf32, #tpu.memory_space<vmem>>, vector<1x32xf32>
    %220 = vector.broadcast %219 : vector<1x32xf32> to vector<16x32xf32>
    %221 = arith.mulf %218, %220 : vector<16x32xf32>
    %c0_91 = arith.constant 0 : index
    %c0_92 = arith.constant 0 : index
    %222 = vector.load %arg11[%c0_91, %c0_92] : memref<1x32xf32, #tpu.memory_space<vmem>>, vector<1x32xf32>
    %223 = vector.broadcast %222 : vector<1x32xf32> to vector<16x32xf32>
    %224 = arith.addf %221, %223 : vector<16x32xf32>
    %c1_93 = arith.constant 1 : index
    %c0_94 = arith.constant 0 : index
    %c0_95 = arith.constant 0 : index
    %225 = vector.load %arg12[%c1_93, %c0_94, %c0_95] : memref<2x16x32xf32, #tpu.memory_space<vmem>>, vector<1x16x32xf32>
    %226 = vector.shape_cast %225 : vector<1x16x32xf32> to vector<16x32xf32>
    %227 = vector.shape_cast %224 : vector<16x32xf32> to vector<1x16x32xf32>
    tpu.vector_store %arg12[%c1_93, %c0_94, %c0_95], %227 {strides = array<i32>} : memref<2x16x32xf32, #tpu.memory_space<vmem>>, vector<1x16x32xf32>,
    return
  }
  func.func @transform_0(%arg0: i32) -> (i32, i32, i32) {
    %c0_i32 = arith.constant 0 : i32
    %c0_i32_0 = arith.constant 0 : i32
    %c0_i32_1 = arith.constant 0 : i32
    return %arg0, %c0_i32, %c0_i32_0 : i32, i32, i32
  }
  func.func @transform_1(%arg0: i32) -> (i32, i32, i32) {
    %c0_i32 = arith.constant 0 : i32
    %c0_i32_0 = arith.constant 0 : i32
    %c0_i32_1 = arith.constant 0 : i32
    return %arg0, %c0_i32, %c0_i32_0 : i32, i32, i32
  }
  func.func @transform_2(%arg0: i32) -> (i32, i32) {
    %c0_i32 = arith.constant 0 : i32
    %c0_i32_0 = arith.constant 0 : i32
    %c0_i32_1 = arith.constant 0 : i32
    return %c0_i32, %c0_i32_0 : i32, i32
  }
  func.func @transform_3(%arg0: i32) -> (i32, i32) {
    %c0_i32 = arith.constant 0 : i32
    %c0_i32_0 = arith.constant 0 : i32
    %c0_i32_1 = arith.constant 0 : i32
    return %c0_i32, %c0_i32_0 : i32, i32
  }
  func.func @transform_4(%arg0: i32) -> (i32, i32) {
    %c0_i32 = arith.constant 0 : i32
    %c0_i32_0 = arith.constant 0 : i32
    %c0_i32_1 = arith.constant 0 : i32
    return %c0_i32, %c0_i32_0 : i32, i32
  }
  func.func @transform_5(%arg0: i32) -> (i32, i32) {
    %c0_i32 = arith.constant 0 : i32
    %c0_i32_0 = arith.constant 0 : i32
    %c0_i32_1 = arith.constant 0 : i32
    return %c0_i32, %c0_i32_0 : i32, i32
  }
  func.func @transform_6(%arg0: i32) -> (i32, i32) {
    %c0_i32 = arith.constant 0 : i32
    %c0_i32_0 = arith.constant 0 : i32
    %c0_i32_1 = arith.constant 0 : i32
    return %c0_i32, %c0_i32_0 : i32, i32
  }
  func.func @transform_7(%arg0: i32) -> (i32, i32) {
    %c0_i32 = arith.constant 0 : i32
    %c0_i32_0 = arith.constant 0 : i32
    %c0_i32_1 = arith.constant 0 : i32
    return %c0_i32, %c0_i32_0 : i32, i32
  }
  func.func @transform_8(%arg0: i32) -> (i32, i32) {
    %c0_i32 = arith.constant 0 : i32
    %c0_i32_0 = arith.constant 0 : i32
    %c0_i32_1 = arith.constant 0 : i32
    return %c0_i32, %c0_i32_0 : i32, i32
  }
  func.func @transform_9(%arg0: i32) -> (i32, i32) {
    %c0_i32 = arith.constant 0 : i32
    %c0_i32_0 = arith.constant 0 : i32
    %c0_i32_1 = arith.constant 0 : i32
    return %c0_i32, %c0_i32_0 : i32, i32
  }
  func.func @transform_10(%arg0: i32) -> (i32, i32) {
    %c0_i32 = arith.constant 0 : i32
    %c0_i32_0 = arith.constant 0 : i32
    %c0_i32_1 = arith.constant 0 : i32
    return %c0_i32, %c0_i32_0 : i32, i32
  }
  func.func @transform_11(%arg0: i32) -> (i32, i32, i32) {
    %c0_i32 = arith.constant 0 : i32
    %c0_i32_0 = arith.constant 0 : i32
    %c0_i32_1 = arith.constant 0 : i32
    return %arg0, %c0_i32, %c0_i32_0 : i32, i32, i32
  }
}

</mosaic_0001>

<llo_original>
// kernel: tpu_custom_call.1
$region0: #{tpu_custom_call.1}
  #allocation0 [shape = 'u32[]', space=smem, size = 0x4, offset = 0x4, fixed_abs, tag = 'smem constant byte address 0x4 - core index']
  #allocation1 [shape = 'u32[144,128]{1,0:T(1,128)}', space=vmem, size = 0x12000, scoped, tag = 'internal scratch']
  %s0 = inlined_call_operand.vmem [shape: f32[4,16,16], index: 0, kind: input, shape index: {}]
  %s1 = inlined_call_operand.vmem [shape: f32[4,16,32], index: 1, kind: input, shape index: {}]
  %s2 = inlined_call_operand.vmem [shape: f32[32,64], index: 2, kind: input, shape index: {}]
  %s3 = inlined_call_operand.vmem [shape: f32[2,64], index: 3, kind: input, shape index: {}]
  %s4 = inlined_call_operand.vmem [shape: f32[2,64], index: 4, kind: input, shape index: {}]
  %s5 = inlined_call_operand.vmem [shape: f32[64,32], index: 5, kind: input, shape index: {}]
  %s6 = inlined_call_operand.vmem [shape: f32[1,32], index: 6, kind: input, shape index: {}]
  %s7 = inlined_call_operand.vmem [shape: f32[64,32], index: 7, kind: input, shape index: {}]
  %s8 = inlined_call_operand.vmem [shape: f32[1,32], index: 8, kind: input, shape index: {}]
  %s9 = inlined_call_operand.vmem [shape: f32[1,32], index: 9, kind: input, shape index: {}]
  %s10 = inlined_call_operand.vmem [shape: f32[1,32], index: 10, kind: input, shape index: {}]
  %s11 = inlined_call_operand.hbm [shape: f32[4,16,32], index: 11, kind: output, shape index: {}]
  %s12 = sld [smem:[#allocation0]]
  $region77: #{tpu_custom_call.1} parent=0
    _
  %s14 = ssub.s32 1, %s12
  %s15 = scalar_select 0, %s14, %s12
  $region1: #{tpu_custom_call.1} parent=0
    #allocation2 [shape = 'u8[32768]{0}', space=vmem, size = 0x8000, scoped, tag = 'output window, operand 0']
    #allocation3 [shape = 's32[2]{0}', space=sflag, size = 0x8, scoped, tag = 'scoped memory for tpu_custom_call.1']
    %16 = vsyncpa [#allocation3], 0
    %s17 = scalar_lea.sflag [#allocation3], 1
    %18 = vsyncpa %s17, 0
    loop: start=0, step=1, limit=4
    $region2: #{tpu_custom_call.1} parent=1 // loop_pre_header
      _
    $region3: #{tpu_custom_call.1} parent=1 // loop_header
      %s20 = sphi 0, %s24
      %p21 = scmp.ge.s32.totalorder %s20, 4
      %s30 = sphi 0, %s32
      %s33 = sphi 0, %s30
      %s34 = sphi 0, %s33
      %s50 = sphi 0, %s34
      %s56 = sphi 0, %s58
      %s59 = sphi 0, %s56
      %s60 = sphi 0, %s59
      %s76 = sphi 0, %s60
      %s80 = sphi 0, %s80
      %s82 = sphi 0, %s80
      %s83 = sphi 0, %s82
      %s97 = sphi 0, %s83
      %s101 = sphi 0, %s101
      %s103 = sphi 0, %s101
      %s104 = sphi 0, %s103
      %s118 = sphi 0, %s104
      %s122 = sphi 0, %s122
      %s124 = sphi 0, %s122
      %s125 = sphi 0, %s124
      %s139 = sphi 0, %s125
      %s143 = sphi 0, %s143
      %s145 = sphi 0, %s143
      %s146 = sphi 0, %s145
      %s160 = sphi 0, %s146
      %s164 = sphi 0, %s164
      %s166 = sphi 0, %s164
      %s167 = sphi 0, %s166
      %s181 = sphi 0, %s167
      %s185 = sphi 0, %s185
      %s187 = sphi 0, %s185
      %s188 = sphi 0, %s187
      %s202 = sphi 0, %s188
      %s206 = sphi 0, %s206
      %s208 = sphi 0, %s206
      %s209 = sphi 0, %s208
      %s223 = sphi 0, %s209
      %s227 = sphi 0, %s227
      %s229 = sphi 0, %s227
      %s230 = sphi 0, %s229
      %s244 = sphi 0, %s230
      %s248 = sphi 0, %s248
      %s250 = sphi 0, %s248
      %s251 = sphi 0, %s250
      %s265 = sphi 0, %s251
      %s271 = sphi 0, %s273
      %s274 = sphi 0, %s271
      %s275 = sphi 0, %s274
      %s291 = sphi 0, %s275
    $region4: #{tpu_custom_call.1} parent=1 // loop_header_branch
      %23 = sbr.rel (%p21) target = $region8
    $region5: #{tpu_custom_call.1} parent=1 // loop_body
      %s25 = ssub.s32 %s20, 1
      %s26 = ssub.s32 %s20, 2
      %s27 = sadd.s32 %s20, 1
      %s28 = ssub.s32 %s20, %s27
      %p29 = scmp.eq.s32.totalorder %s28, 0
      %s31 = sadd.s32 %s30, 1
      %s32 = scalar_select %p29, %s30, %s31
      %p35 = pneg %p29
      %p36 = scmp.eq.s32.totalorder %s20, 1
      %p37 = por %p35, %p36
      %p38 = scmp.ne.s32.totalorder %s30, %s33
      %p39 = scmp.eq.s32.totalorder %s20, 0
      %p40 = por %p38, %p39
      %p41 = scmp.ne.s32.totalorder %s30, %s33
      %p42 = scmp.eq.s32.totalorder %s25, 1
      %p43 = por %p41, %p42
      %p44 = scmp.ne.s32.totalorder %s33, %s34
      %p45 = scmp.eq.s32.totalorder %s25, 0
      %p46 = por %p44, %p45
      %p47 = scmp.ne.s32.totalorder %s33, %s34
      %p48 = scmp.eq.s32.totalorder %s26, 1
      %p49 = por %p47, %p48
      %p51 = scmp.ne.s32.totalorder %s34, %s50
      %p52 = scmp.eq.s32.totalorder %s26, 0
      %p53 = por %p51, %p52
      %s54 = ssub.s32 %s20, %s27
      %p55 = scmp.eq.s32.totalorder %s54, 0
      %s57 = sadd.s32 %s56, 1
      %s58 = scalar_select %p55, %s56, %s57
      %p61 = pneg %p55
      %p62 = scmp.eq.s32.totalorder %s20, 1
      %p63 = por %p61, %p62
      %p64 = scmp.ne.s32.totalorder %s56, %s59
      %p65 = scmp.eq.s32.totalorder %s20, 0
      %p66 = por %p64, %p65
      %p67 = scmp.ne.s32.totalorder %s56, %s59
      %p68 = scmp.eq.s32.totalorder %s25, 1
      %p69 = por %p67, %p68
      %p70 = scmp.ne.s32.totalorder %s59, %s60
      %p71 = scmp.eq.s32.totalorder %s25, 0
      %p72 = por %p70, %p71
      %p73 = scmp.ne.s32.totalorder %s59, %s60
      %p74 = scmp.eq.s32.totalorder %s26, 1
      %p75 = por %p73, %p74
      %p77 = scmp.ne.s32.totalorder %s60, %s76
      %p78 = scmp.eq.s32.totalorder %s26, 0
      %p79 = por %p77, %p78
      %s81 = sadd.s32 %s80, 1
      %p84 = scmp.eq.s32.totalorder %s20, 1
      %p85 = scmp.ne.s32.totalorder %s80, %s82
      %p86 = scmp.eq.s32.totalorder %s20, 0
      %p87 = por %p85, %p86
      %p88 = scmp.ne.s32.totalorder %s80, %s82
      %p89 = scmp.eq.s32.totalorder %s25, 1
      %p90 = por %p88, %p89
      %p91 = scmp.ne.s32.totalorder %s82, %s83
      %p92 = scmp.eq.s32.totalorder %s25, 0
      %p93 = por %p91, %p92
      %p94 = scmp.ne.s32.totalorder %s82, %s83
      %p95 = scmp.eq.s32.totalorder %s26, 1
      %p96 = por %p94, %p95
      %p98 = scmp.ne.s32.totalorder %s83, %s97
      %p99 = scmp.eq.s32.totalorder %s26, 0
      %p100 = por %p98, %p99
      %s102 = sadd.s32 %s101, 1
      %p105 = scmp.eq.s32.totalorder %s20, 1
      %p106 = scmp.ne.s32.totalorder %s101, %s103
      %p107 = scmp.eq.s32.totalorder %s20, 0
      %p108 = por %p106, %p107
      %p109 = scmp.ne.s32.totalorder %s101, %s103
      %p110 = scmp.eq.s32.totalorder %s25, 1
      %p111 = por %p109, %p110
      %p112 = scmp.ne.s32.totalorder %s103, %s104
      %p113 = scmp.eq.s32.totalorder %s25, 0
      %p114 = por %p112, %p113
      %p115 = scmp.ne.s32.totalorder %s103, %s104
      %p116 = scmp.eq.s32.totalorder %s26, 1
      %p117 = por %p115, %p116
      %p119 = scmp.ne.s32.totalorder %s104, %s118
      %p120 = scmp.eq.s32.totalorder %s26, 0
      %p121 = por %p119, %p120
      %s123 = sadd.s32 %s122, 1
      %p126 = scmp.eq.s32.totalorder %s20, 1
      %p127 = scmp.ne.s32.totalorder %s122, %s124
      %p128 = scmp.eq.s32.totalorder %s20, 0
      %p129 = por %p127, %p128
      %p130 = scmp.ne.s32.totalorder %s122, %s124
      %p131 = scmp.eq.s32.totalorder %s25, 1
      %p132 = por %p130, %p131
      %p133 = scmp.ne.s32.totalorder %s124, %s125
      %p134 = scmp.eq.s32.totalorder %s25, 0
      %p135 = por %p133, %p134
      %p136 = scmp.ne.s32.totalorder %s124, %s125
      %p137 = scmp.eq.s32.totalorder %s26, 1
      %p138 = por %p136, %p137
      %p140 = scmp.ne.s32.totalorder %s125, %s139
      %p141 = scmp.eq.s32.totalorder %s26, 0
      %p142 = por %p140, %p141
      %s144 = sadd.s32 %s143, 1
      %p147 = scmp.eq.s32.totalorder %s20, 1
      %p148 = scmp.ne.s32.totalorder %s143, %s145
      %p149 = scmp.eq.s32.totalorder %s20, 0
      %p150 = por %p148, %p149
      %p151 = scmp.ne.s32.totalorder %s143, %s145
      %p152 = scmp.eq.s32.totalorder %s25, 1
      %p153 = por %p151, %p152
      %p154 = scmp.ne.s32.totalorder %s145, %s146
      %p155 = scmp.eq.s32.totalorder %s25, 0
      %p156 = por %p154, %p155
      %p157 = scmp.ne.s32.totalorder %s145, %s146
      %p158 = scmp.eq.s32.totalorder %s26, 1
      %p159 = por %p157, %p158
      %p161 = scmp.ne.s32.totalorder %s146, %s160
      %p162 = scmp.eq.s32.totalorder %s26, 0
      %p163 = por %p161, %p162
      %s165 = sadd.s32 %s164, 1
      %p168 = scmp.eq.s32.totalorder %s20, 1
      %p169 = scmp.ne.s32.totalorder %s164, %s166
      %p170 = scmp.eq.s32.totalorder %s20, 0
      %p171 = por %p169, %p170
      %p172 = scmp.ne.s32.totalorder %s164, %s166
      %p173 = scmp.eq.s32.totalorder %s25, 1
      %p174 = por %p172, %p173
      %p175 = scmp.ne.s32.totalorder %s166, %s167
      %p176 = scmp.eq.s32.totalorder %s25, 0
      %p177 = por %p175, %p176
      %p178 = scmp.ne.s32.totalorder %s166, %s167
      %p179 = scmp.eq.s32.totalorder %s26, 1
      %p180 = por %p178, %p179
      %p182 = scmp.ne.s32.totalorder %s167, %s181
      %p183 = scmp.eq.s32.totalorder %s26, 0
      %p184 = por %p182, %p183
      %s186 = sadd.s32 %s185, 1
      %p189 = scmp.eq.s32.totalorder %s20, 1
      %p190 = scmp.ne.s32.totalorder %s185, %s187
      %p191 = scmp.eq.s32.totalorder %s20, 0
      %p192 = por %p190, %p191
      %p193 = scmp.ne.s32.totalorder %s185, %s187
      %p194 = scmp.eq.s32.totalorder %s25, 1
      %p195 = por %p193, %p194
      %p196 = scmp.ne.s32.totalorder %s187, %s188
      %p197 = scmp.eq.s32.totalorder %s25, 0
      %p198 = por %p196, %p197
      %p199 = scmp.ne.s32.totalorder %s187, %s188
      %p200 = scmp.eq.s32.totalorder %s26, 1
      %p201 = por %p199, %p200
      %p203 = scmp.ne.s32.totalorder %s188, %s202
      %p204 = scmp.eq.s32.totalorder %s26, 0
      %p205 = por %p203, %p204
      %s207 = sadd.s32 %s206, 1
      %p210 = scmp.eq.s32.totalorder %s20, 1
      %p211 = scmp.ne.s32.totalorder %s206, %s208
      %p212 = scmp.eq.s32.totalorder %s20, 0
      %p213 = por %p211, %p212
      %p214 = scmp.ne.s32.totalorder %s206, %s208
      %p215 = scmp.eq.s32.totalorder %s25, 1
      %p216 = por %p214, %p215
      %p217 = scmp.ne.s32.totalorder %s208, %s209
      %p218 = scmp.eq.s32.totalorder %s25, 0
      %p219 = por %p217, %p218
      %p220 = scmp.ne.s32.totalorder %s208, %s209
      %p221 = scmp.eq.s32.totalorder %s26, 1
      %p222 = por %p220, %p221
      %p224 = scmp.ne.s32.totalorder %s209, %s223
      %p225 = scmp.eq.s32.totalorder %s26, 0
      %p226 = por %p224, %p225
      %s228 = sadd.s32 %s227, 1
      %p231 = scmp.eq.s32.totalorder %s20, 1
      %p232 = scmp.ne.s32.totalorder %s227, %s229
      %p233 = scmp.eq.s32.totalorder %s20, 0
      %p234 = por %p232, %p233
      %p235 = scmp.ne.s32.totalorder %s227, %s229
      %p236 = scmp.eq.s32.totalorder %s25, 1
      %p237 = por %p235, %p236
      %p238 = scmp.ne.s32.totalorder %s229, %s230
      %p239 = scmp.eq.s32.totalorder %s25, 0
      %p240 = por %p238, %p239
      %p241 = scmp.ne.s32.totalorder %s229, %s230
      %p242 = scmp.eq.s32.totalorder %s26, 1
      %p243 = por %p241, %p242
      %p245 = scmp.ne.s32.totalorder %s230, %s244
      %p246 = scmp.eq.s32.totalorder %s26, 0
      %p247 = por %p245, %p246
      %s249 = sadd.s32 %s248, 1
      %p252 = scmp.eq.s32.totalorder %s20, 1
      %p253 = scmp.ne.s32.totalorder %s248, %s250
      %p254 = scmp.eq.s32.totalorder %s20, 0
      %p255 = por %p253, %p254
      %p256 = scmp.ne.s32.totalorder %s248, %s250
      %p257 = scmp.eq.s32.totalorder %s25, 1
      %p258 = por %p256, %p257
      %p259 = scmp.ne.s32.totalorder %s250, %s251
      %p260 = scmp.eq.s32.totalorder %s25, 0
      %p261 = por %p259, %p260
      %p262 = scmp.ne.s32.totalorder %s250, %s251
      %p263 = scmp.eq.s32.totalorder %s26, 1
      %p264 = por %p262, %p263
      %p266 = scmp.ne.s32.totalorder %s251, %s265
      %p267 = scmp.eq.s32.totalorder %s26, 0
      %p268 = por %p266, %p267
      %s269 = ssub.s32 %s20, %s27
      %p270 = scmp.eq.s32.totalorder %s269, 0
      %s272 = sadd.s32 %s271, 1
      %s273 = scalar_select %p270, %s271, %s272
      %p276 = pneg %p270
      %p277 = scmp.eq.s32.totalorder %s20, 1
      %p278 = por %p276, %p277
      %p279 = scmp.ne.s32.totalorder %s271, %s274
      %p280 = scmp.eq.s32.totalorder %s20, 0
      %p281 = por %p279, %p280
      %p282 = scmp.ne.s32.totalorder %s271, %s274
      %p283 = scmp.eq.s32.totalorder %s25, 1
      %p284 = por %p282, %p283
      %p285 = scmp.ne.s32.totalorder %s274, %s275
      %p286 = scmp.eq.s32.totalorder %s25, 0
      %p287 = por %p285, %p286
      %p288 = scmp.ne.s32.totalorder %s274, %s275
      %p289 = scmp.eq.s32.totalorder %s26, 1
      %p290 = por %p288, %p289
      %p292 = scmp.ne.s32.totalorder %s275, %s291
      %p293 = scmp.eq.s32.totalorder %s26, 0
      %p294 = por %p292, %p293
      %p295 = scmp.le.s32.totalorder 1, %s20
      %p296 = scmp.lt.s32.totalorder %s20, 3
      %p297 = pnand %p295, %p296
      %p298 = pneg %p297
      // Predicated region
      $region9: #{tpu_custom_call.1} parent=5 // pred_check
        _
      $region10: #{tpu_custom_call.1} parent=5 // pred_check_branch
        %300 = sbr.rel (%p297) target = $region12
      $region11: #{tpu_custom_call.1} parent=5 // pred_region
        %s301 = ssub.s32 %s20, 1
        // Predicated region
        $region13: #{tpu_custom_call.1} parent=11 // pred_check
          %p302 = pneg %p93
        $region14: #{tpu_custom_call.1} parent=11 // pred_check_branch
          %304 = sbr.rel (%p302) target = $region16
        $region15: #{tpu_custom_call.1} parent=11 // pred_region
          _
        $region16: #{tpu_custom_call.1} parent=11 // pred_fallthru
          _
        // Predicated region
        $region17: #{tpu_custom_call.1} parent=11 // pred_check
          %p305 = pneg %p114
        $region18: #{tpu_custom_call.1} parent=11 // pred_check_branch
          %307 = sbr.rel (%p305) target = $region20
        $region19: #{tpu_custom_call.1} parent=11 // pred_region
          _
        $region20: #{tpu_custom_call.1} parent=11 // pred_fallthru
          _
        // Predicated region
        $region21: #{tpu_custom_call.1} parent=11 // pred_check
          %p308 = pneg %p135
        $region22: #{tpu_custom_call.1} parent=11 // pred_check_branch
          %310 = sbr.rel (%p308) target = $region24
        $region23: #{tpu_custom_call.1} parent=11 // pred_region
          _
        $region24: #{tpu_custom_call.1} parent=11 // pred_fallthru
          _
        // Predicated region
        $region25: #{tpu_custom_call.1} parent=11 // pred_check
          %p311 = pneg %p156
        $region26: #{tpu_custom_call.1} parent=11 // pred_check_branch
          %313 = sbr.rel (%p311) target = $region28
        $region27: #{tpu_custom_call.1} parent=11 // pred_region
          _
        $region28: #{tpu_custom_call.1} parent=11 // pred_fallthru
          _
        // Predicated region
        $region29: #{tpu_custom_call.1} parent=11 // pred_check
          %p314 = pneg %p177
        $region30: #{tpu_custom_call.1} parent=11 // pred_check_branch
          %316 = sbr.rel (%p314) target = $region32
        $region31: #{tpu_custom_call.1} parent=11 // pred_region
          _
        $region32: #{tpu_custom_call.1} parent=11 // pred_fallthru
          _
        // Predicated region
        $region33: #{tpu_custom_call.1} parent=11 // pred_check
          %p317 = pneg %p198
        $region34: #{tpu_custom_call.1} parent=11 // pred_check_branch
          %319 = sbr.rel (%p317) target = $region36
        $region35: #{tpu_custom_call.1} parent=11 // pred_region
          _
        $region36: #{tpu_custom_call.1} parent=11 // pred_fallthru
          _
        // Predicated region
        $region37: #{tpu_custom_call.1} parent=11 // pred_check
          %p320 = pneg %p219
        $region38: #{tpu_custom_call.1} parent=11 // pred_check_branch
          %322 = sbr.rel (%p320) target = $region40
        $region39: #{tpu_custom_call.1} parent=11 // pred_region
          _
        $region40: #{tpu_custom_call.1} parent=11 // pred_fallthru
          _
        // Predicated region
        $region41: #{tpu_custom_call.1} parent=11 // pred_check
          %p323 = pneg %p240
        $region42: #{tpu_custom_call.1} parent=11 // pred_check_branch
          %325 = sbr.rel (%p323) target = $region44
        $region43: #{tpu_custom_call.1} parent=11 // pred_region
          _
        $region44: #{tpu_custom_call.1} parent=11 // pred_fallthru
          _
        // Predicated region
        $region45: #{tpu_custom_call.1} parent=11 // pred_check
          %p326 = pneg %p261
        $region46: #{tpu_custom_call.1} parent=11 // pred_check_branch
          %328 = sbr.rel (%p326) target = $region48
        $region47: #{tpu_custom_call.1} parent=11 // pred_region
          _
        $region48: #{tpu_custom_call.1} parent=11 // pred_fallthru
          _
      $region12: #{tpu_custom_call.1} parent=5 // pred_fallthru
        _
      %p329 = scmp.lt.s32.totalorder %s20, 2
      // Predicated region
      $region49: #{tpu_custom_call.1} parent=5 // pred_check
        %p330 = pneg %p329
      $region50: #{tpu_custom_call.1} parent=5 // pred_check_branch
        %332 = sbr.rel (%p330) target = $region52
      $region51: #{tpu_custom_call.1} parent=5 // pred_region
        // Predicated region
        $region53: #{tpu_custom_call.1} parent=51 // pred_check
          %p333 = pneg %p40
        $region54: #{tpu_custom_call.1} parent=51 // pred_check_branch
          %335 = sbr.rel (%p333) target = $region56
        $region55: #{tpu_custom_call.1} parent=51 // pred_region
          %s336 = smul.u32 2, %s20
          %p337 = scmp.lt.s32.totalorder %s336, 3
          %s338 = scalar_select %p337, %s336, 3
          %s339 = smul.addr %s338, 2
          %s340 = smul.addr %s339, 8
          %s341 = scalar_lea.vmem %s0, %s340
          %s342 = smul.u32 2, %s20
        $region56: #{tpu_custom_call.1} parent=51 // pred_fallthru
          _
        // Predicated region
        $region57: #{tpu_custom_call.1} parent=51 // pred_check
          %p343 = pneg %p66
        $region58: #{tpu_custom_call.1} parent=51 // pred_check_branch
          %345 = sbr.rel (%p343) target = $region60
        $region59: #{tpu_custom_call.1} parent=51 // pred_region
          %s346 = smul.u32 2, %s20
          %p347 = scmp.lt.s32.totalorder %s346, 3
          %s348 = scalar_select %p347, %s346, 3
          %s349 = smul.addr %s348, 2
          %s350 = smul.addr %s349, 8
          %s351 = scalar_lea.vmem %s1, %s350
          %s352 = smul.u32 2, %s20
        $region60: #{tpu_custom_call.1} parent=51 // pred_fallthru
          _
      $region52: #{tpu_custom_call.1} parent=5 // pred_fallthru
        _
      %p353 = scmp.le.s32.totalorder 1, %s20
      %p354 = scmp.lt.s32.totalorder %s20, 3
      %p355 = pnand %p353, %p354
      %p356 = pneg %p355
      // Predicated region
      $region61: #{tpu_custom_call.1} parent=5 // pred_check
        _
      $region62: #{tpu_custom_call.1} parent=5 // pred_check_branch
        %358 = sbr.rel (%p355) target = $region64
      $region63: #{tpu_custom_call.1} parent=5 // pred_region
        %s359 = ssub.s32 %s20, 1
        %s360 = smul.u32 2, %s25
        %p361 = scmp.lt.s32.totalorder %s360, 3
        %s362 = scalar_select %p361, %s360, 3
        %s363 = smul.addr %s362, 2
        %s364 = smul.addr %s363, 8
        %s365 = scalar_lea.vmem %s0, %s364
        %p366 = pneg %p46
        %p367 = pneg %p43
        %s368 = smul.u32 2, %s25
        %p369 = scmp.lt.s32.totalorder %s368, 3
        %s370 = scalar_select %p369, %s368, 3
        %s371 = smul.addr %s370, 2
        %s372 = smul.addr %s371, 8
        %s373 = scalar_lea.vmem %s1, %s372
        %p374 = pneg %p72
        %p375 = pneg %p69
        %p376 = pneg %p93
        %p377 = pneg %p90
        %p378 = pneg %p114
        %p379 = pneg %p111
        %p380 = pneg %p135
        %p381 = pneg %p132
        %p382 = pneg %p156
        %p383 = pneg %p153
        %p384 = pneg %p177
        %p385 = pneg %p174
        %p386 = pneg %p198
        %p387 = pneg %p195
        %p388 = pneg %p219
        %p389 = pneg %p216
        %p390 = pneg %p240
        %p391 = pneg %p237
        %p392 = pneg %p261
        %p393 = pneg %p258
        %p394 = pneg %p287
        %p395 = pneg %p284
        %s396 = sand.u32 %s274, 1
        %s397 = scalar_lea.sflag [#allocation3], %s396
        %s398 = sand.u32 %s274, 1
        %s399 = smul.addr %s398, 32
        %s400 = scalar_lea.vmem [#allocation2], %s399
        %s401 = smul.u32 2, %s25
        %p402 = scmp.lt.s32.totalorder %s401, 3
        %s403 = scalar_select %p402, %s401, 3
        %s404 = smul.addr %s403, 2
        %s405 = smul.addr %s404, 8
        %s406 = scalar_lea.vmem %s0, %s405
        %s407 = smul.u32 2, %s25
        %s408 = smul.u32 2, %s25
        %p409 = scmp.lt.s32.totalorder %s408, 3
        %s410 = scalar_select %p409, %s408, 3
        %s411 = smul.addr %s410, 2
        %s412 = smul.addr %s411, 8
        %s413 = scalar_lea.vmem %s1, %s412
        %s414 = smul.u32 2, %s25
        %s415 = smul.u32 2, %s25
        %v416 = vld [vmem:[%s413] sm:$0xff]
        %v417 = vld [vmem:[%s413 + $0x8] sm:$0xff]
        %v418 = vld [vmem:[%s413 + $0x10] sm:$0xff]
        %v419 = vld [vmem:[%s413 + $0x18] sm:$0xff]
        %v420 = vld [vmem:[%s2] sm:$0xff]
        %v421 = vld [vmem:[%s2 + $0x8] sm:$0xff]
        %v422 = vld [vmem:[%s2 + $0x10] sm:$0xff]
        %v423 = vld [vmem:[%s2 + $0x18] sm:$0xff]
        %vm424 = vcmask 261120
        %v426 = vsel %vm424, %v416, 0
        %v429 = vsel %vm424, %v417, 0
        %v432 = vsel %vm424, %v418, 0
        %v435 = vsel %vm424, %v419, 0
        %437 = vmatprep.subr.mxu0 0.0
        %438 = vmatpush1.msra.mxu0 0.0
        %439 = vmatprep.subr.mxu0 0.0
        %440 = vmatpush1.msra.mxu0 0.0
        %441 = vmatprep.subr.mxu0 0.0
        %442 = vmatpush1.msra.mxu0 0.0
        %443 = vmatprep.subr.mxu0 0.0
        %444 = vmatpush1.msra.mxu0 0.0
        %445 = vmatprep.subr.mxu0 0.0
        %446 = vmatpush1.msra.mxu0 0.0
        %447 = vmatprep.subr.mxu0 0.0
        %448 = vmatpush1.msra.mxu0 0.0
        %449 = vmatprep.subr.mxu0 0.0
        %450 = vmatpush1.msra.mxu0 0.0
        %451 = vmatprep.subr.mxu0 0.0
        %452 = vmatpush1.msra.mxu0 0.0
        %453 = vmatprep.subr.mxu0 0.0
        %454 = vmatpush1.msra.mxu0 0.0
        %455 = vmatprep.subr.mxu0 0.0
        %456 = vmatpush1.msra.mxu0 0.0
        %457 = vmatprep.subr.mxu0 0.0
        %458 = vmatpush1.msra.mxu0 0.0
        %459 = vmatprep.subr.mxu0 0.0
        %460 = vmatpush1.msra.mxu0 0.0
        %461 = vmatprep.subr.mxu0 0.0
        %462 = vmatpush1.msra.mxu0 %v423
        %463 = vmatprep.subr.mxu0 0.0
        %464 = vmatpush1.msra.mxu0 %v422
        %465 = vmatprep.subr.mxu0 0.0
        %466 = vmatpush1.msra.mxu0 %v421
        %467 = vmatprep.subr.mxu0 0.0
        %468 = vmatpush1.msra.mxu0 %v420
        %469 = vmatprep.subr.mxu0 0.0
        %470 = vmatpush2.msra.mxu0 0.0
        %471 = vmatprep.subr.mxu0 0.0
        %472 = vmatpush2.msra.mxu0 0.0
        %473 = vmatprep.subr.mxu0 0.0
        %474 = vmatpush2.msra.mxu0 0.0
        %475 = vmatprep.subr.mxu0 0.0
        %476 = vmatpush2.msra.mxu0 0.0
        %477 = vmatprep.subr.mxu0 0.0
        %478 = vmatpush2.msra.mxu0 0.0
        %479 = vmatprep.subr.mxu0 0.0
        %480 = vmatpush2.msra.mxu0 0.0
        %481 = vmatprep.subr.mxu0 0.0
        %482 = vmatpush2.msra.mxu0 0.0
        %483 = vmatprep.subr.mxu0 0.0
        %484 = vmatpush2.msra.mxu0 0.0
        %485 = vmatprep.subr.mxu0 0.0
        %486 = vmatpush2.msra.mxu0 0.0
        %487 = vmatprep.subr.mxu0 0.0
        %488 = vmatpush2.msra.mxu0 0.0
        %489 = vmatprep.subr.mxu0 0.0
        %490 = vmatpush2.msra.mxu0 0.0
        %491 = vmatprep.subr.mxu0 0.0
        %492 = vmatpush2.msra.mxu0 0.0
        %493 = vmatprep.subr.mxu0 0.0
        %494 = vmatpush2.msra.mxu0 0.0
        %495 = vmatprep.subr.mxu0 0.0
        %496 = vmatpush2.msra.mxu0 0.0
        %497 = vmatprep.subr.mxu0 0.0
        %498 = vmatpush2.msra.mxu0 0.0
        %499 = vmatprep.subr.mxu0 0.0
        %500 = vmatpush2.msra.mxu0 0.0
        %501 = vmatprep.mubr.f32.mxu0 0.0
        %502 = vmatmul.mubr.f32.gmra.mxu0 %v426
        %v503 = vpop.f32.mrf.mxu0
        %v504 = vadd.f32 0.0, %v503
        %v505 = vpop.f32.mrf.mxu0
        %506 = vmatprep.mubr.f32.mxu0 0.0
        %507 = vmatmul.mubr.f32.gmra.mxu0 %v429
        %v508 = vpop.f32.mrf.mxu0
        %v509 = vadd.f32 0.0, %v508
        %v510 = vpop.f32.mrf.mxu0
        %511 = vmatprep.mubr.f32.mxu0 0.0
        %512 = vmatmul.mubr.f32.gmra.mxu0 %v432
        %v513 = vpop.f32.mrf.mxu0
        %v514 = vadd.f32 0.0, %v513
        %v515 = vpop.f32.mrf.mxu0
        %516 = vmatprep.mubr.f32.mxu0 0.0
        %517 = vmatmul.mubr.f32.gmra.mxu0 %v435
        %v518 = vpop.f32.mrf.mxu0
        %v519 = vadd.f32 0.0, %v518
        %v520 = vpop.f32.mrf.mxu0
        %521 = vdwg.mxu0
        %v522 = vld [vmem:[%s3] sm:$0x3]
        %vm523 = vcmask 523264
        %v525 = vsel %vm523, %v522, 0
        %v528 = vsel %vm523, %v504, 0
        %v531 = vsel %vm523, %v509, 0
        %v534 = vsel %vm523, %v514, 0
        %v537 = vsel %vm523, %v519, 0
        %539 = vmatprep.subr.mxu0 0.0
        %540 = vmatpush1.xpose.msra.mxu0 0.0
        %541 = vmatprep.subr.mxu0 0.0
        %542 = vmatpush1.xpose.msra.mxu0 0.0
        %543 = vmatprep.subr.mxu0 0.0
        %544 = vmatpush1.xpose.msra.mxu0 0.0
        %545 = vmatprep.subr.mxu0 0.0
        %546 = vmatpush1.xpose.msra.mxu0 0.0
        %547 = vmatprep.subr.mxu0 0.0
        %548 = vmatpush1.xpose.msra.mxu0 0.0
        %549 = vmatprep.subr.mxu0 0.0
        %550 = vmatpush1.xpose.msra.mxu0 0.0
        %551 = vmatprep.subr.mxu0 0.0
        %552 = vmatpush1.xpose.msra.mxu0 0.0
        %553 = vmatprep.subr.mxu0 0.0
        %554 = vmatpush1.xpose.msra.mxu0 0.0
        %555 = vmatprep.subr.mxu0 0.0
        %556 = vmatpush1.xpose.msra.mxu0 0.0
        %557 = vmatprep.subr.mxu0 0.0
        %558 = vmatpush1.xpose.msra.mxu0 0.0
        %559 = vmatprep.subr.mxu0 0.0
        %560 = vmatpush1.xpose.msra.mxu0 0.0
        %561 = vmatprep.subr.mxu0 0.0
        %562 = vmatpush1.xpose.msra.mxu0 0.0
        %563 = vmatprep.subr.mxu0 0.0
        %564 = vmatpush1.xpose.msra.mxu0 %v537
        %565 = vmatprep.subr.mxu0 0.0
        %566 = vmatpush1.xpose.msra.mxu0 %v534
        %567 = vmatprep.subr.mxu0 0.0
        %568 = vmatpush1.xpose.msra.mxu0 %v531
        %569 = vmatprep.subr.mxu0 0.0
        %570 = vmatpush1.xpose.msra.mxu0 %v528
        %571 = vmatprep.subr.mxu0 0.0
        %572 = vmatpush2.xpose.msra.mxu0 0.0
        %573 = vmatprep.subr.mxu0 0.0
        %574 = vmatpush2.xpose.msra.mxu0 0.0
        %575 = vmatprep.subr.mxu0 0.0
        %576 = vmatpush2.xpose.msra.mxu0 0.0
        %577 = vmatprep.subr.mxu0 0.0
        %578 = vmatpush2.xpose.msra.mxu0 0.0
        %579 = vmatprep.subr.mxu0 0.0
        %580 = vmatpush2.xpose.msra.mxu0 0.0
        %581 = vmatprep.subr.mxu0 0.0
        %582 = vmatpush2.xpose.msra.mxu0 0.0
        %583 = vmatprep.subr.mxu0 0.0
        %584 = vmatpush2.xpose.msra.mxu0 0.0
        %585 = vmatprep.subr.mxu0 0.0
        %586 = vmatpush2.xpose.msra.mxu0 0.0
        %587 = vmatprep.subr.mxu0 0.0
        %588 = vmatpush2.xpose.msra.mxu0 0.0
        %589 = vmatprep.subr.mxu0 0.0
        %590 = vmatpush2.xpose.msra.mxu0 0.0
        %591 = vmatprep.subr.mxu0 0.0
        %592 = vmatpush2.xpose.msra.mxu0 0.0
        %593 = vmatprep.subr.mxu0 0.0
        %594 = vmatpush2.xpose.msra.mxu0 0.0
        %595 = vmatprep.subr.mxu0 0.0
        %596 = vmatpush2.xpose.msra.mxu0 0.0
        %597 = vmatprep.subr.mxu0 0.0
        %598 = vmatpush2.xpose.msra.mxu0 0.0
        %599 = vmatprep.subr.mxu0 0.0
        %600 = vmatpush2.xpose.msra.mxu0 0.0
        %601 = vmatprep.subr.mxu0 0.0
        %602 = vmatpush2.xpose.msra.mxu0 0.0
        %603 = vmatprep.mubr.f32.mxu0 0.0
        %604 = vmatmul.mubr.f32.gmra.mxu0 %v525
        %v605 = vpop.f32.mrf.mxu0
        %v606 = vadd.f32 0.0, %v605
        %v607 = vpop.f32.mrf.mxu0
        %608 = vdwg.mxu0
        %v609 = vld [vmem:[%s4] sm:$0x3]
        %v611 = vsel %vm523, %v609, 0
        %613 = vmatprep.subr.mxu0 0.0
        %614 = vmatpush1.xpose.msra.mxu0 0.0
        %615 = vmatprep.subr.mxu0 0.0
        %616 = vmatpush1.xpose.msra.mxu0 0.0
        %617 = vmatprep.subr.mxu0 0.0
        %618 = vmatpush1.xpose.msra.mxu0 0.0
        %619 = vmatprep.subr.mxu0 0.0
        %620 = vmatpush1.xpose.msra.mxu0 0.0
        %621 = vmatprep.subr.mxu0 0.0
        %622 = vmatpush1.xpose.msra.mxu0 0.0
        %623 = vmatprep.subr.mxu0 0.0
        %624 = vmatpush1.xpose.msra.mxu0 0.0
        %625 = vmatprep.subr.mxu0 0.0
        %626 = vmatpush1.xpose.msra.mxu0 0.0
        %627 = vmatprep.subr.mxu0 0.0
        %628 = vmatpush1.xpose.msra.mxu0 0.0
        %629 = vmatprep.subr.mxu0 0.0
        %630 = vmatpush1.xpose.msra.mxu0 0.0
        %631 = vmatprep.subr.mxu0 0.0
        %632 = vmatpush1.xpose.msra.mxu0 0.0
        %633 = vmatprep.subr.mxu0 0.0
        %634 = vmatpush1.xpose.msra.mxu0 0.0
        %635 = vmatprep.subr.mxu0 0.0
        %636 = vmatpush1.xpose.msra.mxu0 0.0
        %637 = vmatprep.subr.mxu0 0.0
        %638 = vmatpush1.xpose.msra.mxu0 0.0
        %639 = vmatprep.subr.mxu0 0.0
        %640 = vmatpush1.xpose.msra.mxu0 0.0
        %641 = vmatprep.subr.mxu0 0.0
        %642 = vmatpush1.xpose.msra.mxu0 0.0
        %643 = vmatprep.subr.mxu0 0.0
        %644 = vmatpush1.xpose.msra.mxu0 %v611
        %645 = vmatprep.subr.mxu0 0.0
        %646 = vmatpush2.xpose.msra.mxu0 0.0
        %647 = vmatprep.subr.mxu0 0.0
        %648 = vmatpush2.xpose.msra.mxu0 0.0
        %649 = vmatprep.subr.mxu0 0.0
        %650 = vmatpush2.xpose.msra.mxu0 0.0
        %651 = vmatprep.subr.mxu0 0.0
        %652 = vmatpush2.xpose.msra.mxu0 0.0
        %653 = vmatprep.subr.mxu0 0.0
        %654 = vmatpush2.xpose.msra.mxu0 0.0
        %655 = vmatprep.subr.mxu0 0.0
        %656 = vmatpush2.xpose.msra.mxu0 0.0
        %657 = vmatprep.subr.mxu0 0.0
        %658 = vmatpush2.xpose.msra.mxu0 0.0
        %659 = vmatprep.subr.mxu0 0.0
        %660 = vmatpush2.xpose.msra.mxu0 0.0
        %661 = vmatprep.subr.mxu0 0.0
        %662 = vmatpush2.xpose.msra.mxu0 0.0
        %663 = vmatprep.subr.mxu0 0.0
        %664 = vmatpush2.xpose.msra.mxu0 0.0
        %665 = vmatprep.subr.mxu0 0.0
        %666 = vmatpush2.xpose.msra.mxu0 0.0
        %667 = vmatprep.subr.mxu0 0.0
        %668 = vmatpush2.xpose.msra.mxu0 0.0
        %669 = vmatprep.subr.mxu0 0.0
        %670 = vmatpush2.xpose.msra.mxu0 0.0
        %671 = vmatprep.subr.mxu0 0.0
        %672 = vmatpush2.xpose.msra.mxu0 0.0
        %673 = vmatprep.subr.mxu0 0.0
        %674 = vmatpush2.xpose.msra.mxu0 0.0
        %675 = vmatprep.subr.mxu0 0.0
        %676 = vmatpush2.xpose.msra.mxu0 0.0
        %677 = vmatprep.mubr.f32.mxu0 0.0
        %678 = vmatmul.mubr.f32.gmra.mxu0 %v528
        %v679 = vpop.f32.mrf.mxu0
        %v680 = vadd.f32 0.0, %v679
        %v681 = vpop.f32.mrf.mxu0
        %682 = vmatprep.mubr.f32.mxu0 0.0
        %683 = vmatmul.mubr.f32.gmra.mxu0 %v531
        %v684 = vpop.f32.mrf.mxu0
        %v685 = vadd.f32 0.0, %v684
        %v686 = vpop.f32.mrf.mxu0
        %687 = vmatprep.mubr.f32.mxu0 0.0
        %688 = vmatmul.mubr.f32.gmra.mxu0 %v534
        %v689 = vpop.f32.mrf.mxu0
        %v690 = vadd.f32 0.0, %v689
        %v691 = vpop.f32.mrf.mxu0
        %692 = vmatprep.mubr.f32.mxu0 0.0
        %693 = vmatmul.mubr.f32.gmra.mxu0 %v537
        %v694 = vpop.f32.mrf.mxu0
        %v695 = vadd.f32 0.0, %v694
        %v696 = vpop.f32.mrf.mxu0
        %697 = vdwg.mxu0
        %v698 = vld [vmem:[%s406] sm:$0xff]
        %v699 = vld [vmem:[%s406 + $0x8] sm:$0xff]
        %701 = vset.pattern.permute.xlu0 0
        %702 = vperm.xlu0 %701, %v680
        %v703 = vpop.permute.xlu0 %702
        %706 = vset.pattern.permute.xlu0 0
        %707 = vperm.xlu0 %706, %v685
        %v708 = vpop.permute.xlu0 %707
        %v710 = vlaneseq
        %v711 = vshrl.u32 %v710, 7
        %v712 = vsub.s32 0, %v711
        %v713 = vrot.slane %v606, %v712
        %v714 = vadd.f32 %v703, %v713
        %v715 = vadd.f32 %v708, %v713
        %v716 = vmul.f32 %v714, 0.2
        %v717 = vmul.f32 %v715, 0.2
        %v718 = vmax.f32 %v714, %v716
        %v719 = vmax.f32 %v715, %v717
        %vm720 = vcmp.gt.f32.partialorder %v698, 0.0
        %vm721 = vcmp.gt.f32.partialorder %v699, 0.0
        %v722 = vsel %vm720, %v718, -1e+30
        %v723 = vsel %vm721, %v719, -1e+30
        %vm724 = vcmask 130048
        %v725 = vsel %vm724, %v722, -inf
        %726 = vmax.xlane.f32.xlu0 %v725
        %v727 = vpop.xlane.xlu0 %726
        %v728 = vsel %vm724, %v723, -inf
        %729 = vmax.xlane.f32.xlu0 %v728
        %v730 = vpop.xlane.xlu0 %729
        %v731 = vsub.f32 %v722, %v727
        %v732 = vsub.f32 %v723, %v730
        %v733 = vmul.f32 %v731, 1.442695
        %v734 = vpow.pop %v733
        %v735 = vmul.f32 %v732, 1.442695
        %v736 = vpow.pop %v735
        %v737 = vsel %vm724, %v734, 0.0
        %738 = vadd.xlane.f32.xlu0 %v737
        %v739 = vpop.xlane.xlu0 %738
        %v740 = vsel %vm724, %v736, 0.0
        %741 = vadd.xlane.f32.xlu0 %v740
        %v742 = vpop.xlane.xlu0 %741
        %v744 = vsel %vm724, %v734, 0
        %v747 = vsel %vm724, %v736, 0
        %749 = vmatprep.subr.mxu0 0.0
        %750 = vmatpush1.msra.mxu0 0.0
        %751 = vmatprep.subr.mxu0 0.0
        %752 = vmatpush1.msra.mxu0 0.0
        %753 = vmatprep.subr.mxu0 0.0
        %754 = vmatpush1.msra.mxu0 0.0
        %755 = vmatprep.subr.mxu0 0.0
        %756 = vmatpush1.msra.mxu0 0.0
        %757 = vmatprep.subr.mxu0 0.0
        %758 = vmatpush1.msra.mxu0 0.0
        %759 = vmatprep.subr.mxu0 0.0
        %760 = vmatpush1.msra.mxu0 0.0
        %761 = vmatprep.subr.mxu0 0.0
        %762 = vmatpush1.msra.mxu0 0.0
        %763 = vmatprep.subr.mxu0 0.0
        %764 = vmatpush1.msra.mxu0 0.0
        %765 = vmatprep.subr.mxu0 0.0
        %766 = vmatpush1.msra.mxu0 0.0
        %767 = vmatprep.subr.mxu0 0.0
        %768 = vmatpush1.msra.mxu0 0.0
        %769 = vmatprep.subr.mxu0 0.0
        %770 = vmatpush1.msra.mxu0 0.0
        %771 = vmatprep.subr.mxu0 0.0
        %772 = vmatpush1.msra.mxu0 0.0
        %773 = vmatprep.subr.mxu0 0.0
        %774 = vmatpush1.msra.mxu0 0.0
        %775 = vmatprep.subr.mxu0 0.0
        %776 = vmatpush1.msra.mxu0 0.0
        %777 = vmatprep.subr.mxu0 0.0
        %778 = vmatpush1.msra.mxu0 %v509
        %779 = vmatprep.subr.mxu0 0.0
        %780 = vmatpush1.msra.mxu0 %v504
        %781 = vmatprep.subr.mxu0 0.0
        %782 = vmatpush2.msra.mxu0 0.0
        %783 = vmatprep.subr.mxu0 0.0
        %784 = vmatpush2.msra.mxu0 0.0
        %785 = vmatprep.subr.mxu0 0.0
        %786 = vmatpush2.msra.mxu0 0.0
        %787 = vmatprep.subr.mxu0 0.0
        %788 = vmatpush2.msra.mxu0 0.0
        %789 = vmatprep.subr.mxu0 0.0
        %790 = vmatpush2.msra.mxu0 0.0
        %791 = vmatprep.subr.mxu0 0.0
        %792 = vmatpush2.msra.mxu0 0.0
        %793 = vmatprep.subr.mxu0 0.0
        %794 = vmatpush2.msra.mxu0 0.0
        %795 = vmatprep.subr.mxu0 0.0
        %796 = vmatpush2.msra.mxu0 0.0
        %797 = vmatprep.subr.mxu0 0.0
        %798 = vmatpush2.msra.mxu0 0.0
        %799 = vmatprep.subr.mxu0 0.0
        %800 = vmatpush2.msra.mxu0 0.0
        %801 = vmatprep.subr.mxu0 0.0
        %802 = vmatpush2.msra.mxu0 0.0
        %803 = vmatprep.subr.mxu0 0.0
        %804 = vmatpush2.msra.mxu0 0.0
        %805 = vmatprep.subr.mxu0 0.0
        %806 = vmatpush2.msra.mxu0 0.0
        %807 = vmatprep.subr.mxu0 0.0
        %808 = vmatpush2.msra.mxu0 0.0
        %809 = vmatprep.subr.mxu0 0.0
        %810 = vmatpush2.msra.mxu0 0.0
        %811 = vmatprep.subr.mxu0 0.0
        %812 = vmatpush2.msra.mxu0 0.0
        %813 = vmatprep.mubr.f32.mxu0 0.0
        %814 = vmatmul.mubr.f32.gmra.mxu0 %v744
        %v815 = vpop.f32.mrf.mxu0
        %v816 = vadd.f32 0.0, %v815
        %v817 = vpop.f32.mrf.mxu0
        %818 = vmatprep.mubr.f32.mxu0 0.0
        %819 = vmatmul.mubr.f32.gmra.mxu0 %v747
        %v820 = vpop.f32.mrf.mxu0
        %v821 = vadd.f32 0.0, %v820
        %v822 = vpop.f32.mrf.mxu0
        %823 = vdwg.mxu0
        %v824 = vrcp.pop %v739
        %v825 = vrcp.pop %v742
        %v826 = vmul.f32 %v816, %v824
        %v827 = vmul.f32 %v821, %v825
        %828 = vset.pattern.permute.xlu0 1
        %829 = vperm.xlu0 %828, %v680
        %v830 = vpop.permute.xlu0 %829
        %832 = vset.pattern.permute.xlu0 1
        %833 = vperm.xlu0 %832, %v685
        %v834 = vpop.permute.xlu0 %833
        %v836 = vlaneseq
        %v837 = vshrl.u32 %v836, 7
        %v838 = vsub.s32 1, %v837
        %v839 = vrot.slane %v606, %v838
        %v840 = vadd.f32 %v830, %v839
        %v841 = vadd.f32 %v834, %v839
        %v842 = vmul.f32 %v840, 0.2
        %v843 = vmul.f32 %v841, 0.2
        %v844 = vmax.f32 %v840, %v842
        %v845 = vmax.f32 %v841, %v843
        %v846 = vsel %vm720, %v844, -1e+30
        %v847 = vsel %vm721, %v845, -1e+30
        %v848 = vsel %vm724, %v846, -inf
        %849 = vmax.xlane.f32.xlu0 %v848
        %v850 = vpop.xlane.xlu0 %849
        %v851 = vsel %vm724, %v847, -inf
        %852 = vmax.xlane.f32.xlu0 %v851
        %v853 = vpop.xlane.xlu0 %852
        %v854 = vsub.f32 %v846, %v850
        %v855 = vsub.f32 %v847, %v853
        %v856 = vmul.f32 %v854, 1.442695
        %v857 = vpow.pop %v856
        %v858 = vmul.f32 %v855, 1.442695
        %v859 = vpow.pop %v858
        %v860 = vsel %vm724, %v857, 0.0
        %861 = vadd.xlane.f32.xlu0 %v860
        %v862 = vpop.xlane.xlu0 %861
        %v863 = vsel %vm724, %v859, 0.0
        %864 = vadd.xlane.f32.xlu0 %v863
        %v865 = vpop.xlane.xlu0 %864
        %866 = vrot.lane.b32.xlu0 %v504, 96
        %v867 = vpop.permute.xlu0 %866
        %868 = vrot.lane.b32.xlu0 %v509, 96
        %v869 = vpop.permute.xlu0 %868
        %v873 = vsel %vm724, %v857, 0
        %v876 = vsel %vm724, %v859, 0
        %878 = vmatprep.subr.mxu0 0.0
        %879 = vmatpush1.msra.mxu0 0.0
        %880 = vmatprep.subr.mxu0 0.0
        %881 = vmatpush1.msra.mxu0 0.0
        %882 = vmatprep.subr.mxu0 0.0
        %883 = vmatpush1.msra.mxu0 0.0
        %884 = vmatprep.subr.mxu0 0.0
        %885 = vmatpush1.msra.mxu0 0.0
        %886 = vmatprep.subr.mxu0 0.0
        %887 = vmatpush1.msra.mxu0 0.0
        %888 = vmatprep.subr.mxu0 0.0
        %889 = vmatpush1.msra.mxu0 0.0
        %890 = vmatprep.subr.mxu0 0.0
        %891 = vmatpush1.msra.mxu0 0.0
        %892 = vmatprep.subr.mxu0 0.0
        %893 = vmatpush1.msra.mxu0 0.0
        %894 = vmatprep.subr.mxu0 0.0
        %895 = vmatpush1.msra.mxu0 0.0
        %896 = vmatprep.subr.mxu0 0.0
        %897 = vmatpush1.msra.mxu0 0.0
        %898 = vmatprep.subr.mxu0 0.0
        %899 = vmatpush1.msra.mxu0 0.0
        %900 = vmatprep.subr.mxu0 0.0
        %901 = vmatpush1.msra.mxu0 0.0
        %902 = vmatprep.subr.mxu0 0.0
        %903 = vmatpush1.msra.mxu0 0.0
        %904 = vmatprep.subr.mxu0 0.0
        %905 = vmatpush1.msra.mxu0 0.0
        %906 = vmatprep.subr.mxu0 0.0
        %907 = vmatpush1.msra.mxu0 %v869
        %908 = vmatprep.subr.mxu0 0.0
        %909 = vmatpush1.msra.mxu0 %v867
        %910 = vmatprep.subr.mxu0 0.0
        %911 = vmatpush2.msra.mxu0 0.0
        %912 = vmatprep.subr.mxu0 0.0
        %913 = vmatpush2.msra.mxu0 0.0
        %914 = vmatprep.subr.mxu0 0.0
        %915 = vmatpush2.msra.mxu0 0.0
        %916 = vmatprep.subr.mxu0 0.0
        %917 = vmatpush2.msra.mxu0 0.0
        %918 = vmatprep.subr.mxu0 0.0
        %919 = vmatpush2.msra.mxu0 0.0
        %920 = vmatprep.subr.mxu0 0.0
        %921 = vmatpush2.msra.mxu0 0.0
        %922 = vmatprep.subr.mxu0 0.0
        %923 = vmatpush2.msra.mxu0 0.0
        %924 = vmatprep.subr.mxu0 0.0
        %925 = vmatpush2.msra.mxu0 0.0
        %926 = vmatprep.subr.mxu0 0.0
        %927 = vmatpush2.msra.mxu0 0.0
        %928 = vmatprep.subr.mxu0 0.0
        %929 = vmatpush2.msra.mxu0 0.0
        %930 = vmatprep.subr.mxu0 0.0
        %931 = vmatpush2.msra.mxu0 0.0
        %932 = vmatprep.subr.mxu0 0.0
        %933 = vmatpush2.msra.mxu0 0.0
        %934 = vmatprep.subr.mxu0 0.0
        %935 = vmatpush2.msra.mxu0 0.0
        %936 = vmatprep.subr.mxu0 0.0
        %937 = vmatpush2.msra.mxu0 0.0
        %938 = vmatprep.subr.mxu0 0.0
        %939 = vmatpush2.msra.mxu0 0.0
        %940 = vmatprep.subr.mxu0 0.0
        %941 = vmatpush2.msra.mxu0 0.0
        %942 = vmatprep.mubr.f32.mxu0 0.0
        %943 = vmatmul.mubr.f32.gmra.mxu0 %v873
        %v944 = vpop.f32.mrf.mxu0
        %v945 = vadd.f32 0.0, %v944
        %v946 = vpop.f32.mrf.mxu0
        %947 = vmatprep.mubr.f32.mxu0 0.0
        %948 = vmatmul.mubr.f32.gmra.mxu0 %v876
        %v949 = vpop.f32.mrf.mxu0
        %v950 = vadd.f32 0.0, %v949
        %v951 = vpop.f32.mrf.mxu0
        %952 = vdwg.mxu0
        %v953 = vrcp.pop %v862
        %v954 = vrcp.pop %v865
        %v955 = vmul.f32 %v945, %v953
        %v956 = vmul.f32 %v950, %v954
        %959 = vrot.lane.b32.xlu0 %v955, 32
        %v960 = vpop.permute.xlu0 %959
        %961 = vrot.lane.b32.xlu0 %v956, 32
        %v962 = vpop.permute.xlu0 %961
        %v965 = vsel %vm424, %v826, %v960
        %v966 = vsel %vm424, %v827, %v962
        %v967 = vmax.f32 %v965, 0.0
        %v968 = vmax.f32 %v966, 0.0
        %s969 = scalar_lea.vmem %s406, 16
        %v970 = vld [vmem:[%s969] sm:$0xff]
        %v971 = vld [vmem:[%s969 + $0x8] sm:$0xff]
        %973 = vset.pattern.permute.xlu0 0
        %974 = vperm.xlu0 %973, %v690
        %v975 = vpop.permute.xlu0 %974
        %978 = vset.pattern.permute.xlu0 0
        %979 = vperm.xlu0 %978, %v695
        %v980 = vpop.permute.xlu0 %979
        %v982 = vadd.f32 %v975, %v713
        %v983 = vadd.f32 %v980, %v713
        %v984 = vmul.f32 %v982, 0.2
        %v985 = vmul.f32 %v983, 0.2
        %v986 = vmax.f32 %v982, %v984
        %v987 = vmax.f32 %v983, %v985
        %vm988 = vcmp.gt.f32.partialorder %v970, 0.0
        %vm989 = vcmp.gt.f32.partialorder %v971, 0.0
        %992 = vrot.lane.b32.xlu0 %v986, 112
        %v993 = vpop.permute.xlu0 %992
        %994 = vrot.lane.b32.xlu0 %v987, 112
        %v995 = vpop.permute.xlu0 %994
        %v998 = vsel %vm988, %v993, -1e+30
        %v999 = vsel %vm989, %v995, -1e+30
        %v1000 = vsel %vm724, %v998, -inf
        %1001 = vmax.xlane.f32.xlu0 %v1000
        %v1002 = vpop.xlane.xlu0 %1001
        %v1003 = vsel %vm724, %v999, -inf
        %1004 = vmax.xlane.f32.xlu0 %v1003
        %v1005 = vpop.xlane.xlu0 %1004
        %v1006 = vsub.f32 %v998, %v1002
        %v1007 = vsub.f32 %v999, %v1005
        %v1008 = vmul.f32 %v1006, 1.442695
        %v1009 = vpow.pop %v1008
        %v1010 = vmul.f32 %v1007, 1.442695
        %v1011 = vpow.pop %v1010
        %v1012 = vsel %vm724, %v1009, 0.0
        %1013 = vadd.xlane.f32.xlu0 %v1012
        %v1014 = vpop.xlane.xlu0 %1013
        %v1015 = vsel %vm724, %v1011, 0.0
        %1016 = vadd.xlane.f32.xlu0 %v1015
        %v1017 = vpop.xlane.xlu0 %1016
        %v1019 = vsel %vm724, %v1009, 0
        %v1022 = vsel %vm724, %v1011, 0
        %1024 = vmatprep.subr.mxu0 0.0
        %1025 = vmatpush1.msra.mxu0 0.0
        %1026 = vmatprep.subr.mxu0 0.0
        %1027 = vmatpush1.msra.mxu0 0.0
        %1028 = vmatprep.subr.mxu0 0.0
        %1029 = vmatpush1.msra.mxu0 0.0
        %1030 = vmatprep.subr.mxu0 0.0
        %1031 = vmatpush1.msra.mxu0 0.0
        %1032 = vmatprep.subr.mxu0 0.0
        %1033 = vmatpush1.msra.mxu0 0.0
        %1034 = vmatprep.subr.mxu0 0.0
        %1035 = vmatpush1.msra.mxu0 0.0
        %1036 = vmatprep.subr.mxu0 0.0
        %1037 = vmatpush1.msra.mxu0 0.0
        %1038 = vmatprep.subr.mxu0 0.0
        %1039 = vmatpush1.msra.mxu0 0.0
        %1040 = vmatprep.subr.mxu0 0.0
        %1041 = vmatpush1.msra.mxu0 0.0
        %1042 = vmatprep.subr.mxu0 0.0
        %1043 = vmatpush1.msra.mxu0 0.0
        %1044 = vmatprep.subr.mxu0 0.0
        %1045 = vmatpush1.msra.mxu0 0.0
        %1046 = vmatprep.subr.mxu0 0.0
        %1047 = vmatpush1.msra.mxu0 0.0
        %1048 = vmatprep.subr.mxu0 0.0
        %1049 = vmatpush1.msra.mxu0 0.0
        %1050 = vmatprep.subr.mxu0 0.0
        %1051 = vmatpush1.msra.mxu0 0.0
        %1052 = vmatprep.subr.mxu0 0.0
        %1053 = vmatpush1.msra.mxu0 %v519
        %1054 = vmatprep.subr.mxu0 0.0
        %1055 = vmatpush1.msra.mxu0 %v514
        %1056 = vmatprep.subr.mxu0 0.0
        %1057 = vmatpush2.msra.mxu0 0.0
        %1058 = vmatprep.subr.mxu0 0.0
        %1059 = vmatpush2.msra.mxu0 0.0
        %1060 = vmatprep.subr.mxu0 0.0
        %1061 = vmatpush2.msra.mxu0 0.0
        %1062 = vmatprep.subr.mxu0 0.0
        %1063 = vmatpush2.msra.mxu0 0.0
        %1064 = vmatprep.subr.mxu0 0.0
        %1065 = vmatpush2.msra.mxu0 0.0
        %1066 = vmatprep.subr.mxu0 0.0
        %1067 = vmatpush2.msra.mxu0 0.0
        %1068 = vmatprep.subr.mxu0 0.0
        %1069 = vmatpush2.msra.mxu0 0.0
        %1070 = vmatprep.subr.mxu0 0.0
        %1071 = vmatpush2.msra.mxu0 0.0
        %1072 = vmatprep.subr.mxu0 0.0
        %1073 = vmatpush2.msra.mxu0 0.0
        %1074 = vmatprep.subr.mxu0 0.0
        %1075 = vmatpush2.msra.mxu0 0.0
        %1076 = vmatprep.subr.mxu0 0.0
        %1077 = vmatpush2.msra.mxu0 0.0
        %1078 = vmatprep.subr.mxu0 0.0
        %1079 = vmatpush2.msra.mxu0 0.0
        %1080 = vmatprep.subr.mxu0 0.0
        %1081 = vmatpush2.msra.mxu0 0.0
        %1082 = vmatprep.subr.mxu0 0.0
        %1083 = vmatpush2.msra.mxu0 0.0
        %1084 = vmatprep.subr.mxu0 0.0
        %1085 = vmatpush2.msra.mxu0 0.0
        %1086 = vmatprep.subr.mxu0 0.0
        %1087 = vmatpush2.msra.mxu0 0.0
        %1088 = vmatprep.mubr.f32.mxu0 0.0
        %1089 = vmatmul.mubr.f32.gmra.mxu0 %v1019
        %v1090 = vpop.f32.mrf.mxu0
        %v1091 = vadd.f32 0.0, %v1090
        %v1092 = vpop.f32.mrf.mxu0
        %1093 = vmatprep.mubr.f32.mxu0 0.0
        %1094 = vmatmul.mubr.f32.gmra.mxu0 %v1022
        %v1095 = vpop.f32.mrf.mxu0
        %v1096 = vadd.f32 0.0, %v1095
        %v1097 = vpop.f32.mrf.mxu0
        %1098 = vdwg.mxu0
        %v1099 = vrcp.pop %v1014
        %v1100 = vrcp.pop %v1017
        %v1101 = vmul.f32 %v1091, %v1099
        %v1102 = vmul.f32 %v1096, %v1100
        %1103 = vset.pattern.permute.xlu0 1
        %1104 = vperm.xlu0 %1103, %v690
        %v1105 = vpop.permute.xlu0 %1104
        %1107 = vset.pattern.permute.xlu0 1
        %1108 = vperm.xlu0 %1107, %v695
        %v1109 = vpop.permute.xlu0 %1108
        %v1111 = vadd.f32 %v1105, %v839
        %v1112 = vadd.f32 %v1109, %v839
        %v1113 = vmul.f32 %v1111, 0.2
        %v1114 = vmul.f32 %v1112, 0.2
        %v1115 = vmax.f32 %v1111, %v1113
        %v1116 = vmax.f32 %v1112, %v1114
        %1119 = vrot.lane.b32.xlu0 %v1115, 112
        %v1120 = vpop.permute.xlu0 %1119
        %1121 = vrot.lane.b32.xlu0 %v1116, 112
        %v1122 = vpop.permute.xlu0 %1121
        %v1125 = vsel %vm988, %v1120, -1e+30
        %v1126 = vsel %vm989, %v1122, -1e+30
        %v1127 = vsel %vm724, %v1125, -inf
        %1128 = vmax.xlane.f32.xlu0 %v1127
        %v1129 = vpop.xlane.xlu0 %1128
        %v1130 = vsel %vm724, %v1126, -inf
        %1131 = vmax.xlane.f32.xlu0 %v1130
        %v1132 = vpop.xlane.xlu0 %1131
        %v1133 = vsub.f32 %v1125, %v1129
        %v1134 = vsub.f32 %v1126, %v1132
        %v1135 = vmul.f32 %v1133, 1.442695
        %v1136 = vpow.pop %v1135
        %v1137 = vmul.f32 %v1134, 1.442695
        %v1138 = vpow.pop %v1137
        %v1139 = vsel %vm724, %v1136, 0.0
        %1140 = vadd.xlane.f32.xlu0 %v1139
        %v1141 = vpop.xlane.xlu0 %1140
        %v1142 = vsel %vm724, %v1138, 0.0
        %1143 = vadd.xlane.f32.xlu0 %v1142
        %v1144 = vpop.xlane.xlu0 %1143
        %1145 = vrot.lane.b32.xlu0 %v514, 96
        %v1146 = vpop.permute.xlu0 %1145
        %1147 = vrot.lane.b32.xlu0 %v519, 96
        %v1148 = vpop.permute.xlu0 %1147
        %v1152 = vsel %vm724, %v1136, 0
        %v1155 = vsel %vm724, %v1138, 0
        %1157 = vmatprep.subr.mxu0 0.0
        %1158 = vmatpush1.msra.mxu0 0.0
        %1159 = vmatprep.subr.mxu0 0.0
        %1160 = vmatpush1.msra.mxu0 0.0
        %1161 = vmatprep.subr.mxu0 0.0
        %1162 = vmatpush1.msra.mxu0 0.0
        %1163 = vmatprep.subr.mxu0 0.0
        %1164 = vmatpush1.msra.mxu0 0.0
        %1165 = vmatprep.subr.mxu0 0.0
        %1166 = vmatpush1.msra.mxu0 0.0
        %1167 = vmatprep.subr.mxu0 0.0
        %1168 = vmatpush1.msra.mxu0 0.0
        %1169 = vmatprep.subr.mxu0 0.0
        %1170 = vmatpush1.msra.mxu0 0.0
        %1171 = vmatprep.subr.mxu0 0.0
        %1172 = vmatpush1.msra.mxu0 0.0
        %1173 = vmatprep.subr.mxu0 0.0
        %1174 = vmatpush1.msra.mxu0 0.0
        %1175 = vmatprep.subr.mxu0 0.0
        %1176 = vmatpush1.msra.mxu0 0.0
        %1177 = vmatprep.subr.mxu0 0.0
        %1178 = vmatpush1.msra.mxu0 0.0
        %1179 = vmatprep.subr.mxu0 0.0
        %1180 = vmatpush1.msra.mxu0 0.0
        %1181 = vmatprep.subr.mxu0 0.0
        %1182 = vmatpush1.msra.mxu0 0.0
        %1183 = vmatprep.subr.mxu0 0.0
        %1184 = vmatpush1.msra.mxu0 0.0
        %1185 = vmatprep.subr.mxu0 0.0
        %1186 = vmatpush1.msra.mxu0 %v1148
        %1187 = vmatprep.subr.mxu0 0.0
        %1188 = vmatpush1.msra.mxu0 %v1146
        %1189 = vmatprep.subr.mxu0 0.0
        %1190 = vmatpush2.msra.mxu0 0.0
        %1191 = vmatprep.subr.mxu0 0.0
        %1192 = vmatpush2.msra.mxu0 0.0
        %1193 = vmatprep.subr.mxu0 0.0
        %1194 = vmatpush2.msra.mxu0 0.0
        %1195 = vmatprep.subr.mxu0 0.0
        %1196 = vmatpush2.msra.mxu0 0.0
        %1197 = vmatprep.subr.mxu0 0.0
        %1198 = vmatpush2.msra.mxu0 0.0
        %1199 = vmatprep.subr.mxu0 0.0
        %1200 = vmatpush2.msra.mxu0 0.0
        %1201 = vmatprep.subr.mxu0 0.0
        %1202 = vmatpush2.msra.mxu0 0.0
        %1203 = vmatprep.subr.mxu0 0.0
        %1204 = vmatpush2.msra.mxu0 0.0
        %1205 = vmatprep.subr.mxu0 0.0
        %1206 = vmatpush2.msra.mxu0 0.0
        %1207 = vmatprep.subr.mxu0 0.0
        %1208 = vmatpush2.msra.mxu0 0.0
        %1209 = vmatprep.subr.mxu0 0.0
        %1210 = vmatpush2.msra.mxu0 0.0
        %1211 = vmatprep.subr.mxu0 0.0
        %1212 = vmatpush2.msra.mxu0 0.0
        %1213 = vmatprep.subr.mxu0 0.0
        %1214 = vmatpush2.msra.mxu0 0.0
        %1215 = vmatprep.subr.mxu0 0.0
        %1216 = vmatpush2.msra.mxu0 0.0
        %1217 = vmatprep.subr.mxu0 0.0
        %1218 = vmatpush2.msra.mxu0 0.0
        %1219 = vmatprep.subr.mxu0 0.0
        %1220 = vmatpush2.msra.mxu0 0.0
        %1221 = vmatprep.mubr.f32.mxu0 0.0
        %1222 = vmatmul.mubr.f32.gmra.mxu0 %v1152
        %v1223 = vpop.f32.mrf.mxu0
        %v1224 = vadd.f32 0.0, %v1223
        %v1225 = vpop.f32.mrf.mxu0
        %1226 = vmatprep.mubr.f32.mxu0 0.0
        %1227 = vmatmul.mubr.f32.gmra.mxu0 %v1155
        %v1228 = vpop.f32.mrf.mxu0
        %v1229 = vadd.f32 0.0, %v1228
        %v1230 = vpop.f32.mrf.mxu0
        %1231 = vdwg.mxu0
        %v1232 = vrcp.pop %v1141
        %v1233 = vrcp.pop %v1144
        %v1234 = vmul.f32 %v1224, %v1232
        %v1235 = vmul.f32 %v1229, %v1233
        %1238 = vrot.lane.b32.xlu0 %v1234, 32
        %v1239 = vpop.permute.xlu0 %1238
        %1240 = vrot.lane.b32.xlu0 %v1235, 32
        %v1241 = vpop.permute.xlu0 %1240
        %v1244 = vsel %vm424, %v1101, %v1239
        %v1245 = vsel %vm424, %v1102, %v1241
        %v1246 = vmax.f32 %v1244, 0.0
        %v1247 = vmax.f32 %v1245, 0.0
        %v1248 = vld [vmem:[%s5] sm:$0xff]
        %v1249 = vld [vmem:[%s5 + $0x8] sm:$0xff]
        %v1250 = vld [vmem:[%s5 + $0x10] sm:$0xff]
        %v1251 = vld [vmem:[%s5 + $0x18] sm:$0xff]
        %v1252 = vld [vmem:[%s5 + $0x20] sm:$0xff]
        %v1253 = vld [vmem:[%s5 + $0x28] sm:$0xff]
        %v1254 = vld [vmem:[%s5 + $0x30] sm:$0xff]
        %v1255 = vld [vmem:[%s5 + $0x38] sm:$0xff]
        %v1257 = vsel %vm523, %v967, 0
        %v1260 = vsel %vm523, %v968, 0
        %v1263 = vsel %vm523, %v1246, 0
        %v1266 = vsel %vm523, %v1247, 0
        %1268 = vmatprep.subr.mxu0 0.0
        %1269 = vmatpush1.msra.mxu0 0.0
        %1270 = vmatprep.subr.mxu0 0.0
        %1271 = vmatpush1.msra.mxu0 0.0
        %1272 = vmatprep.subr.mxu0 0.0
        %1273 = vmatpush1.msra.mxu0 0.0
        %1274 = vmatprep.subr.mxu0 0.0
        %1275 = vmatpush1.msra.mxu0 0.0
        %1276 = vmatprep.subr.mxu0 0.0
        %1277 = vmatpush1.msra.mxu0 0.0
        %1278 = vmatprep.subr.mxu0 0.0
        %1279 = vmatpush1.msra.mxu0 0.0
        %1280 = vmatprep.subr.mxu0 0.0
        %1281 = vmatpush1.msra.mxu0 0.0
        %1282 = vmatprep.subr.mxu0 0.0
        %1283 = vmatpush1.msra.mxu0 0.0
        %1284 = vmatprep.subr.mxu0 0.0
        %1285 = vmatpush1.msra.mxu0 %v1255
        %1286 = vmatprep.subr.mxu0 0.0
        %1287 = vmatpush1.msra.mxu0 %v1254
        %1288 = vmatprep.subr.mxu0 0.0
        %1289 = vmatpush1.msra.mxu0 %v1253
        %1290 = vmatprep.subr.mxu0 0.0
        %1291 = vmatpush1.msra.mxu0 %v1252
        %1292 = vmatprep.subr.mxu0 0.0
        %1293 = vmatpush1.msra.mxu0 %v1251
        %1294 = vmatprep.subr.mxu0 0.0
        %1295 = vmatpush1.msra.mxu0 %v1250
        %1296 = vmatprep.subr.mxu0 0.0
        %1297 = vmatpush1.msra.mxu0 %v1249
        %1298 = vmatprep.subr.mxu0 0.0
        %1299 = vmatpush1.msra.mxu0 %v1248
        %1300 = vmatprep.subr.mxu0 0.0
        %1301 = vmatpush2.msra.mxu0 0.0
        %1302 = vmatprep.subr.mxu0 0.0
        %1303 = vmatpush2.msra.mxu0 0.0
        %1304 = vmatprep.subr.mxu0 0.0
        %1305 = vmatpush2.msra.mxu0 0.0
        %1306 = vmatprep.subr.mxu0 0.0
        %1307 = vmatpush2.msra.mxu0 0.0
        %1308 = vmatprep.subr.mxu0 0.0
        %1309 = vmatpush2.msra.mxu0 0.0
        %1310 = vmatprep.subr.mxu0 0.0
        %1311 = vmatpush2.msra.mxu0 0.0
        %1312 = vmatprep.subr.mxu0 0.0
        %1313 = vmatpush2.msra.mxu0 0.0
        %1314 = vmatprep.subr.mxu0 0.0
        %1315 = vmatpush2.msra.mxu0 0.0
        %1316 = vmatprep.subr.mxu0 0.0
        %1317 = vmatpush2.msra.mxu0 0.0
        %1318 = vmatprep.subr.mxu0 0.0
        %1319 = vmatpush2.msra.mxu0 0.0
        %1320 = vmatprep.subr.mxu0 0.0
        %1321 = vmatpush2.msra.mxu0 0.0
        %1322 = vmatprep.subr.mxu0 0.0
        %1323 = vmatpush2.msra.mxu0 0.0
        %1324 = vmatprep.subr.mxu0 0.0
        %1325 = vmatpush2.msra.mxu0 0.0
        %1326 = vmatprep.subr.mxu0 0.0
        %1327 = vmatpush2.msra.mxu0 0.0
        %1328 = vmatprep.subr.mxu0 0.0
        %1329 = vmatpush2.msra.mxu0 0.0
        %1330 = vmatprep.subr.mxu0 0.0
        %1331 = vmatpush2.msra.mxu0 0.0
        %1332 = vmatprep.mubr.f32.mxu0 0.0
        %1333 = vmatmul.mubr.f32.gmra.mxu0 %v1257
        %v1334 = vpop.f32.mrf.mxu0
        %v1335 = vadd.f32 0.0, %v1334
        %v1336 = vpop.f32.mrf.mxu0
        %1337 = vmatprep.mubr.f32.mxu0 0.0
        %1338 = vmatmul.mubr.f32.gmra.mxu0 %v1260
        %v1339 = vpop.f32.mrf.mxu0
        %v1340 = vadd.f32 0.0, %v1339
        %v1341 = vpop.f32.mrf.mxu0
        %1342 = vmatprep.mubr.f32.mxu0 0.0
        %1343 = vmatmul.mubr.f32.gmra.mxu0 %v1263
        %v1344 = vpop.f32.mrf.mxu0
        %v1345 = vadd.f32 0.0, %v1344
        %v1346 = vpop.f32.mrf.mxu0
        %1347 = vmatprep.mubr.f32.mxu0 0.0
        %1348 = vmatmul.mubr.f32.gmra.mxu0 %v1266
        %v1349 = vpop.f32.mrf.mxu0
        %v1350 = vadd.f32 0.0, %v1349
        %v1351 = vpop.f32.mrf.mxu0
        %1352 = vdwg.mxu0
        %v1353 = vld [vmem:[%s7] sm:$0xff]
        %v1354 = vld [vmem:[%s7 + $0x8] sm:$0xff]
        %v1355 = vld [vmem:[%s7 + $0x10] sm:$0xff]
        %v1356 = vld [vmem:[%s7 + $0x18] sm:$0xff]
        %v1357 = vld [vmem:[%s7 + $0x20] sm:$0xff]
        %v1358 = vld [vmem:[%s7 + $0x28] sm:$0xff]
        %v1359 = vld [vmem:[%s7 + $0x30] sm:$0xff]
        %v1360 = vld [vmem:[%s7 + $0x38] sm:$0xff]
        %v1361 = vld [vmem:[%s8] sm:$0x1]
        %v1363 = vlaneseq
        %v1364 = vshrl.u32 %v1363, 7
        %v1365 = vsub.s32 0, %v1364
        %v1366 = vrot.slane %v1361, %v1365
        %1368 = vmatprep.subr.mxu0 0.0
        %1369 = vmatpush1.msra.mxu0 0.0
        %1370 = vmatprep.subr.mxu0 0.0
        %1371 = vmatpush1.msra.mxu0 0.0
        %1372 = vmatprep.subr.mxu0 0.0
        %1373 = vmatpush1.msra.mxu0 0.0
        %1374 = vmatprep.subr.mxu0 0.0
        %1375 = vmatpush1.msra.mxu0 0.0
        %1376 = vmatprep.subr.mxu0 0.0
        %1377 = vmatpush1.msra.mxu0 0.0
        %1378 = vmatprep.subr.mxu0 0.0
        %1379 = vmatpush1.msra.mxu0 0.0
        %1380 = vmatprep.subr.mxu0 0.0
        %1381 = vmatpush1.msra.mxu0 0.0
        %1382 = vmatprep.subr.mxu0 0.0
        %1383 = vmatpush1.msra.mxu0 0.0
        %1384 = vmatprep.subr.mxu0 0.0
        %1385 = vmatpush1.msra.mxu0 %v1360
        %1386 = vmatprep.subr.mxu0 0.0
        %1387 = vmatpush1.msra.mxu0 %v1359
        %1388 = vmatprep.subr.mxu0 0.0
        %1389 = vmatpush1.msra.mxu0 %v1358
        %1390 = vmatprep.subr.mxu0 0.0
        %1391 = vmatpush1.msra.mxu0 %v1357
        %1392 = vmatprep.subr.mxu0 0.0
        %1393 = vmatpush1.msra.mxu0 %v1356
        %1394 = vmatprep.subr.mxu0 0.0
        %1395 = vmatpush1.msra.mxu0 %v1355
        %1396 = vmatprep.subr.mxu0 0.0
        %1397 = vmatpush1.msra.mxu0 %v1354
        %1398 = vmatprep.subr.mxu0 0.0
        %1399 = vmatpush1.msra.mxu0 %v1353
        %1400 = vmatprep.subr.mxu0 0.0
        %1401 = vmatpush2.msra.mxu0 0.0
        %1402 = vmatprep.subr.mxu0 0.0
        %1403 = vmatpush2.msra.mxu0 0.0
        %1404 = vmatprep.subr.mxu0 0.0
        %1405 = vmatpush2.msra.mxu0 0.0
        %1406 = vmatprep.subr.mxu0 0.0
        %1407 = vmatpush2.msra.mxu0 0.0
        %1408 = vmatprep.subr.mxu0 0.0
        %1409 = vmatpush2.msra.mxu0 0.0
        %1410 = vmatprep.subr.mxu0 0.0
        %1411 = vmatpush2.msra.mxu0 0.0
        %1412 = vmatprep.subr.mxu0 0.0
        %1413 = vmatpush2.msra.mxu0 0.0
        %1414 = vmatprep.subr.mxu0 0.0
        %1415 = vmatpush2.msra.mxu0 0.0
        %1416 = vmatprep.subr.mxu0 0.0
        %1417 = vmatpush2.msra.mxu0 0.0
        %1418 = vmatprep.subr.mxu0 0.0
        %1419 = vmatpush2.msra.mxu0 0.0
        %1420 = vmatprep.subr.mxu0 0.0
        %1421 = vmatpush2.msra.mxu0 0.0
        %1422 = vmatprep.subr.mxu0 0.0
        %1423 = vmatpush2.msra.mxu0 0.0
        %1424 = vmatprep.subr.mxu0 0.0
        %1425 = vmatpush2.msra.mxu0 0.0
        %1426 = vmatprep.subr.mxu0 0.0
        %1427 = vmatpush2.msra.mxu0 0.0
        %1428 = vmatprep.subr.mxu0 0.0
        %1429 = vmatpush2.msra.mxu0 0.0
        %1430 = vmatprep.subr.mxu0 0.0
        %1431 = vmatpush2.msra.mxu0 0.0
        %1432 = vmatprep.mubr.f32.mxu0 0.0
        %1433 = vmatmul.mubr.f32.gmra.mxu0 %v1257
        %v1434 = vpop.f32.mrf.mxu0
        %v1435 = vadd.f32 %v1366, %v1434
        %v1436 = vpop.f32.mrf.mxu0
        %1437 = vmatprep.mubr.f32.mxu0 0.0
        %1438 = vmatmul.mubr.f32.gmra.mxu0 %v1260
        %v1439 = vpop.f32.mrf.mxu0
        %v1440 = vadd.f32 %v1366, %v1439
        %v1441 = vpop.f32.mrf.mxu0
        %1442 = vmatprep.mubr.f32.mxu0 0.0
        %1443 = vmatmul.mubr.f32.gmra.mxu0 %v1263
        %v1444 = vpop.f32.mrf.mxu0
        %v1445 = vadd.f32 %v1366, %v1444
        %v1446 = vpop.f32.mrf.mxu0
        %1447 = vmatprep.mubr.f32.mxu0 0.0
        %1448 = vmatmul.mubr.f32.gmra.mxu0 %v1266
        %v1449 = vpop.f32.mrf.mxu0
        %v1450 = vadd.f32 %v1366, %v1449
        %v1451 = vpop.f32.mrf.mxu0
        %1452 = vdwg.mxu0
        %v1453 = vmax.f32 %v1435, 0.0
        %v1454 = vmax.f32 %v1440, 0.0
        %v1455 = vmax.f32 %v1445, 0.0
        %v1456 = vmax.f32 %v1450, 0.0
        %v1457 = vsel %vm724, %v698, 0.0
        %1458 = vadd.xlane.f32.xlu0 %v1457
        %v1459 = vpop.xlane.xlu0 %1458
        %v1460 = vsel %vm724, %v699, 0.0
        %1461 = vadd.xlane.f32.xlu0 %v1460
        %v1462 = vpop.xlane.xlu0 %1461
        %v1463 = vmax.f32 %v1459, 1.0
        %v1464 = vmax.f32 %v1462, 1.0
        %v1465 = vadd.f32 %v1457, %v1460
        %v1466 = vrot.slane %v1465, 4
        %v1467 = vadd.f32 %v1465, %v1466
        %v1468 = vrot.slane %v1467, 2
        %v1469 = vadd.f32 %v1467, %v1468
        %v1470 = vrot.slane %v1469, 1
        %v1471 = vadd.f32 %v1469, %v1470
        %v1472 = vmax.f32 %v1471, 1.0
        %v1473 = vrsqrt.pop %v1463
        %v1474 = vrsqrt.pop %v1464
        %v1475 = vmul.f32 %v1473, %v698
        %v1476 = vmul.f32 %v1474, %v699
        %v1477 = vrsqrt.pop %v1472
        %v1478 = vmul.f32 %v1475, %v1477
        %v1479 = vmul.f32 %v1476, %v1477
        %v1480 = vld [vmem:[%s6] sm:$0x1]
        %v1482 = vlaneseq
        %v1483 = vshrl.u32 %v1482, 7
        %v1484 = vsub.s32 0, %v1483
        %v1485 = vrot.slane %v1480, %v1484
        %v1488 = vsel %vm724, %v1478, 0
        %v1491 = vsel %vm724, %v1479, 0
        %1493 = vmatprep.subr.mxu0 0.0
        %1494 = vmatpush1.msra.mxu0 0.0
        %1495 = vmatprep.subr.mxu0 0.0
        %1496 = vmatpush1.msra.mxu0 0.0
        %1497 = vmatprep.subr.mxu0 0.0
        %1498 = vmatpush1.msra.mxu0 0.0
        %1499 = vmatprep.subr.mxu0 0.0
        %1500 = vmatpush1.msra.mxu0 0.0
        %1501 = vmatprep.subr.mxu0 0.0
        %1502 = vmatpush1.msra.mxu0 0.0
        %1503 = vmatprep.subr.mxu0 0.0
        %1504 = vmatpush1.msra.mxu0 0.0
        %1505 = vmatprep.subr.mxu0 0.0
        %1506 = vmatpush1.msra.mxu0 0.0
        %1507 = vmatprep.subr.mxu0 0.0
        %1508 = vmatpush1.msra.mxu0 0.0
        %1509 = vmatprep.subr.mxu0 0.0
        %1510 = vmatpush1.msra.mxu0 0.0
        %1511 = vmatprep.subr.mxu0 0.0
        %1512 = vmatpush1.msra.mxu0 0.0
        %1513 = vmatprep.subr.mxu0 0.0
        %1514 = vmatpush1.msra.mxu0 0.0
        %1515 = vmatprep.subr.mxu0 0.0
        %1516 = vmatpush1.msra.mxu0 0.0
        %1517 = vmatprep.subr.mxu0 0.0
        %1518 = vmatpush1.msra.mxu0 0.0
        %1519 = vmatprep.subr.mxu0 0.0
        %1520 = vmatpush1.msra.mxu0 0.0
        %1521 = vmatprep.subr.mxu0 0.0
        %1522 = vmatpush1.msra.mxu0 %v1340
        %1523 = vmatprep.subr.mxu0 0.0
        %1524 = vmatpush1.msra.mxu0 %v1335
        %1525 = vmatprep.subr.mxu0 0.0
        %1526 = vmatpush2.msra.mxu0 0.0
        %1527 = vmatprep.subr.mxu0 0.0
        %1528 = vmatpush2.msra.mxu0 0.0
        %1529 = vmatprep.subr.mxu0 0.0
        %1530 = vmatpush2.msra.mxu0 0.0
        %1531 = vmatprep.subr.mxu0 0.0
        %1532 = vmatpush2.msra.mxu0 0.0
        %1533 = vmatprep.subr.mxu0 0.0
        %1534 = vmatpush2.msra.mxu0 0.0
        %1535 = vmatprep.subr.mxu0 0.0
        %1536 = vmatpush2.msra.mxu0 0.0
        %1537 = vmatprep.subr.mxu0 0.0
        %1538 = vmatpush2.msra.mxu0 0.0
        %1539 = vmatprep.subr.mxu0 0.0
        %1540 = vmatpush2.msra.mxu0 0.0
        %1541 = vmatprep.subr.mxu0 0.0
        %1542 = vmatpush2.msra.mxu0 0.0
        %1543 = vmatprep.subr.mxu0 0.0
        %1544 = vmatpush2.msra.mxu0 0.0
        %1545 = vmatprep.subr.mxu0 0.0
        %1546 = vmatpush2.msra.mxu0 0.0
        %1547 = vmatprep.subr.mxu0 0.0
        %1548 = vmatpush2.msra.mxu0 0.0
        %1549 = vmatprep.subr.mxu0 0.0
        %1550 = vmatpush2.msra.mxu0 0.0
        %1551 = vmatprep.subr.mxu0 0.0
        %1552 = vmatpush2.msra.mxu0 0.0
        %1553 = vmatprep.subr.mxu0 0.0
        %1554 = vmatpush2.msra.mxu0 0.0
        %1555 = vmatprep.subr.mxu0 0.0
        %1556 = vmatpush2.msra.mxu0 0.0
        %1557 = vmatprep.mubr.f32.mxu0 0.0
        %1558 = vmatmul.mubr.f32.gmra.mxu0 %v1488
        %v1559 = vpop.f32.mrf.mxu0
        %v1560 = vadd.f32 %v1485, %v1559
        %v1561 = vpop.f32.mrf.mxu0
        %1562 = vmatprep.mubr.f32.mxu0 0.0
        %1563 = vmatmul.mubr.f32.gmra.mxu0 %v1491
        %v1564 = vpop.f32.mrf.mxu0
        %v1565 = vadd.f32 %v1485, %v1564
        %v1566 = vpop.f32.mrf.mxu0
        %1567 = vdwg.mxu0
        %v1568 = vmax.f32 %v1560, 0.0
        %v1569 = vmax.f32 %v1565, 0.0
        %v1570 = vadd.f32 %v1568, %v1453
        %v1571 = vadd.f32 %v1569, %v1454
        %v1572 = vsel %vm424, %v1570, 0.0
        %v1573 = vsel %vm424, %v1571, 0.0
        %v1574 = vadd.f32 %v1572, %v1573
        %v1575 = vrot.slane %v1574, 4
        %v1576 = vadd.f32 %v1574, %v1575
        %v1577 = vrot.slane %v1576, 2
        %v1578 = vadd.f32 %v1576, %v1577
        %v1579 = vrot.slane %v1578, 1
        %v1580 = vadd.f32 %v1578, %v1579
        %v1581 = vrcp.pop 16.0
        %v1582 = vmul.f32 %v1580, %v1581
        %v1583 = vsub.f32 %v1570, %v1582
        %v1584 = vsub.f32 %v1571, %v1582
        %v1585 = vmul.f32 %v1583, %v1583
        %v1586 = vmul.f32 %v1584, %v1584
        %v1587 = vsel %vm424, %v1585, 0.0
        %v1588 = vsel %vm424, %v1586, 0.0
        %v1589 = vadd.f32 %v1587, %v1588
        %v1590 = vrot.slane %v1589, 4
        %v1591 = vadd.f32 %v1589, %v1590
        %v1592 = vrot.slane %v1591, 2
        %v1593 = vadd.f32 %v1591, %v1592
        %v1594 = vrot.slane %v1593, 1
        %v1595 = vadd.f32 %v1593, %v1594
        %v1596 = vmul.f32 %v1595, %v1581
        %v1597 = vadd.f32 %v1596, 1e-05
        %v1598 = vrsqrt.pop %v1597
        %v1599 = vmul.f32 %v1583, %v1598
        %v1600 = vmul.f32 %v1584, %v1598
        %v1601 = vld [vmem:[%s9] sm:$0x1]
        %v1603 = vlaneseq
        %v1604 = vshrl.u32 %v1603, 7
        %v1605 = vsub.s32 0, %v1604
        %v1606 = vrot.slane %v1601, %v1605
        %v1608 = vmul.f32 %v1599, %v1606
        %v1609 = vmul.f32 %v1600, %v1606
        %v1610 = vld [vmem:[%s10] sm:$0x1]
        %v1612 = vlaneseq
        %v1613 = vshrl.u32 %v1612, 7
        %v1614 = vsub.s32 0, %v1613
        %v1615 = vrot.slane %v1610, %v1614
        %v1617 = vadd.f32 %v1608, %v1615
        %v1618 = vadd.f32 %v1609, %v1615
        %1619 = vst.msk [vmem:[%s400] sm:$0xff] %vm424, %v1617
        %1620 = vst.msk [vmem:[%s400 + $0x8] sm:$0xff] %vm424, %v1618
        %v1621 = vld [vmem:[%s969] sm:$0xff]
        %v1622 = vld [vmem:[%s969 + $0x8] sm:$0xff]
        %v1623 = vsel %vm724, %v1621, 0.0
        %1624 = vadd.xlane.f32.xlu0 %v1623
        %v1625 = vpop.xlane.xlu0 %1624
        %v1626 = vsel %vm724, %v1622, 0.0
        %1627 = vadd.xlane.f32.xlu0 %v1626
        %v1628 = vpop.xlane.xlu0 %1627
        %v1629 = vmax.f32 %v1625, 1.0
        %v1630 = vmax.f32 %v1628, 1.0
        %v1631 = vadd.f32 %v1623, %v1626
        %v1632 = vrot.slane %v1631, 4
        %v1633 = vadd.f32 %v1631, %v1632
        %v1634 = vrot.slane %v1633, 2
        %v1635 = vadd.f32 %v1633, %v1634
        %v1636 = vrot.slane %v1635, 1
        %v1637 = vadd.f32 %v1635, %v1636
        %v1638 = vmax.f32 %v1637, 1.0
        %v1639 = vrsqrt.pop %v1629
        %v1640 = vrsqrt.pop %v1630
        %v1641 = vmul.f32 %v1639, %v1621
        %v1642 = vmul.f32 %v1640, %v1622
        %v1643 = vrsqrt.pop %v1638
        %v1644 = vmul.f32 %v1641, %v1643
        %v1645 = vmul.f32 %v1642, %v1643
        %v1646 = vld [vmem:[%s6] sm:$0x1]
        %v1648 = vlaneseq
        %v1649 = vshrl.u32 %v1648, 7
        %v1650 = vsub.s32 0, %v1649
        %v1651 = vrot.slane %v1646, %v1650
        %v1654 = vsel %vm724, %v1644, 0
        %v1657 = vsel %vm724, %v1645, 0
        %1659 = vmatprep.subr.mxu0 0.0
        %1660 = vmatpush1.msra.mxu0 0.0
        %1661 = vmatprep.subr.mxu0 0.0
        %1662 = vmatpush1.msra.mxu0 0.0
        %1663 = vmatprep.subr.mxu0 0.0
        %1664 = vmatpush1.msra.mxu0 0.0
        %1665 = vmatprep.subr.mxu0 0.0
        %1666 = vmatpush1.msra.mxu0 0.0
        %1667 = vmatprep.subr.mxu0 0.0
        %1668 = vmatpush1.msra.mxu0 0.0
        %1669 = vmatprep.subr.mxu0 0.0
        %1670 = vmatpush1.msra.mxu0 0.0
        %1671 = vmatprep.subr.mxu0 0.0
        %1672 = vmatpush1.msra.mxu0 0.0
        %1673 = vmatprep.subr.mxu0 0.0
        %1674 = vmatpush1.msra.mxu0 0.0
        %1675 = vmatprep.subr.mxu0 0.0
        %1676 = vmatpush1.msra.mxu0 0.0
        %1677 = vmatprep.subr.mxu0 0.0
        %1678 = vmatpush1.msra.mxu0 0.0
        %1679 = vmatprep.subr.mxu0 0.0
        %1680 = vmatpush1.msra.mxu0 0.0
        %1681 = vmatprep.subr.mxu0 0.0
        %1682 = vmatpush1.msra.mxu0 0.0
        %1683 = vmatprep.subr.mxu0 0.0
        %1684 = vmatpush1.msra.mxu0 0.0
        %1685 = vmatprep.subr.mxu0 0.0
        %1686 = vmatpush1.msra.mxu0 0.0
        %1687 = vmatprep.subr.mxu0 0.0
        %1688 = vmatpush1.msra.mxu0 %v1350
        %1689 = vmatprep.subr.mxu0 0.0
        %1690 = vmatpush1.msra.mxu0 %v1345
        %1691 = vmatprep.subr.mxu0 0.0
        %1692 = vmatpush2.msra.mxu0 0.0
        %1693 = vmatprep.subr.mxu0 0.0
        %1694 = vmatpush2.msra.mxu0 0.0
        %1695 = vmatprep.subr.mxu0 0.0
        %1696 = vmatpush2.msra.mxu0 0.0
        %1697 = vmatprep.subr.mxu0 0.0
        %1698 = vmatpush2.msra.mxu0 0.0
        %1699 = vmatprep.subr.mxu0 0.0
        %1700 = vmatpush2.msra.mxu0 0.0
        %1701 = vmatprep.subr.mxu0 0.0
        %1702 = vmatpush2.msra.mxu0 0.0
        %1703 = vmatprep.subr.mxu0 0.0
        %1704 = vmatpush2.msra.mxu0 0.0
        %1705 = vmatprep.subr.mxu0 0.0
        %1706 = vmatpush2.msra.mxu0 0.0
        %1707 = vmatprep.subr.mxu0 0.0
        %1708 = vmatpush2.msra.mxu0 0.0
        %1709 = vmatprep.subr.mxu0 0.0
        %1710 = vmatpush2.msra.mxu0 0.0
        %1711 = vmatprep.subr.mxu0 0.0
        %1712 = vmatpush2.msra.mxu0 0.0
        %1713 = vmatprep.subr.mxu0 0.0
        %1714 = vmatpush2.msra.mxu0 0.0
        %1715 = vmatprep.subr.mxu0 0.0
        %1716 = vmatpush2.msra.mxu0 0.0
        %1717 = vmatprep.subr.mxu0 0.0
        %1718 = vmatpush2.msra.mxu0 0.0
        %1719 = vmatprep.subr.mxu0 0.0
        %1720 = vmatpush2.msra.mxu0 0.0
        %1721 = vmatprep.subr.mxu0 0.0
        %1722 = vmatpush2.msra.mxu0 0.0
        %1723 = vmatprep.mubr.f32.mxu0 0.0
        %1724 = vmatmul.mubr.f32.gmra.mxu0 %v1654
        %v1725 = vpop.f32.mrf.mxu0
        %v1726 = vadd.f32 %v1651, %v1725
        %v1727 = vpop.f32.mrf.mxu0
        %1728 = vmatprep.mubr.f32.mxu0 0.0
        %1729 = vmatmul.mubr.f32.gmra.mxu0 %v1657
        %v1730 = vpop.f32.mrf.mxu0
        %v1731 = vadd.f32 %v1651, %v1730
        %v1732 = vpop.f32.mrf.mxu0
        %1733 = vdwg.mxu0
        %v1734 = vmax.f32 %v1726, 0.0
        %v1735 = vmax.f32 %v1731, 0.0
        %v1736 = vadd.f32 %v1734, %v1455
        %v1737 = vadd.f32 %v1735, %v1456
        %v1738 = vsel %vm424, %v1736, 0.0
        %v1739 = vsel %vm424, %v1737, 0.0
        %v1740 = vadd.f32 %v1738, %v1739
        %v1741 = vrot.slane %v1740, 4
        %v1742 = vadd.f32 %v1740, %v1741
        %v1743 = vrot.slane %v1742, 2
        %v1744 = vadd.f32 %v1742, %v1743
        %v1745 = vrot.slane %v1744, 1
        %v1746 = vadd.f32 %v1744, %v1745
        %v1747 = vmul.f32 %v1746, %v1581
        %v1748 = vsub.f32 %v1736, %v1747
        %v1749 = vsub.f32 %v1737, %v1747
        %v1750 = vmul.f32 %v1748, %v1748
        %v1751 = vmul.f32 %v1749, %v1749
        %v1752 = vsel %vm424, %v1750, 0.0
        %v1753 = vsel %vm424, %v1751, 0.0
        %v1754 = vadd.f32 %v1752, %v1753
        %v1755 = vrot.slane %v1754, 4
        %v1756 = vadd.f32 %v1754, %v1755
        %v1757 = vrot.slane %v1756, 2
        %v1758 = vadd.f32 %v1756, %v1757
        %v1759 = vrot.slane %v1758, 1
        %v1760 = vadd.f32 %v1758, %v1759
        %v1761 = vmul.f32 %v1760, %v1581
        %v1762 = vadd.f32 %v1761, 1e-05
        %v1763 = vrsqrt.pop %v1762
        %v1764 = vmul.f32 %v1748, %v1763
        %v1765 = vmul.f32 %v1749, %v1763
        %v1766 = vld [vmem:[%s9] sm:$0x1]
        %v1768 = vlaneseq
        %v1769 = vshrl.u32 %v1768, 7
        %v1770 = vsub.s32 0, %v1769
        %v1771 = vrot.slane %v1766, %v1770
        %v1773 = vmul.f32 %v1764, %v1771
        %v1774 = vmul.f32 %v1765, %v1771
        %v1775 = vld [vmem:[%s10] sm:$0x1]
        %v1777 = vlaneseq
        %v1778 = vshrl.u32 %v1777, 7
        %v1779 = vsub.s32 0, %v1778
        %v1780 = vrot.slane %v1775, %v1779
        %v1782 = vadd.f32 %v1773, %v1780
        %v1783 = vadd.f32 %v1774, %v1780
        %s1784 = scalar_lea.vmem %s400, 16 [#allocation2]
        %1785 = vst.msk [vmem:[%s1784] sm:$0xff] %vm424, %v1782
        %1786 = vst.msk [vmem:[%s1784 + $0x8] sm:$0xff] %vm424, %v1783
        %s1787 = sand.u32 %s274, 1
        %s1788 = scalar_lea.sflag [#allocation3], %s1787
        %s1789 = sand.u32 %s274, 1
        %s1790 = smul.addr %s1789, 32
        %s1791 = scalar_lea.vmem [#allocation2], %s1790
        // Predicated region
        $region65: #{tpu_custom_call.1} parent=63 // pred_check
          %p1792 = pneg %p284
        $region66: #{tpu_custom_call.1} parent=63 // pred_check_branch
          %1794 = sbr.rel (%p1792) target = $region68
        $region67: #{tpu_custom_call.1} parent=63 // pred_region
          %s1795 = smul.u32 2, %s25
          %s1797 = ssub.s32 512, 512
          %1798 = vsyncadd %s1788, %s1797
          %s1799 = smul.addr %s1795, 2
          %s1800 = smul.addr %s1799, 128
          %s1801 = scalar_lea.hbm %s11, %s1800
          %s1802 = sshll.u32 %s1791, 4
          %s1803 = int_to_ptr.vmem [resolvable:$true] %s1802
          %1808 = dma.vmem_to_hbm [thread:$0]  %s1803, 512, %s1801, %s1788, 128, 128, 8
        $region68: #{tpu_custom_call.1} parent=63 // pred_fallthru
          _
      $region64: #{tpu_custom_call.1} parent=5 // pred_fallthru
        _
      %p1809 = scmp.le.s32.totalorder 2, %s20
      // Predicated region
      $region69: #{tpu_custom_call.1} parent=5 // pred_check
        %p1810 = pneg %p1809
      $region70: #{tpu_custom_call.1} parent=5 // pred_check_branch
        %1812 = sbr.rel (%p1810) target = $region72
      $region71: #{tpu_custom_call.1} parent=5 // pred_region
        %s1813 = ssub.s32 %s20, 2
        // Predicated region
        $region73: #{tpu_custom_call.1} parent=71 // pred_check
          %p1814 = pneg %p290
        $region74: #{tpu_custom_call.1} parent=71 // pred_check_branch
          %1816 = sbr.rel (%p1814) target = $region76
        $region75: #{tpu_custom_call.1} parent=71 // pred_region
          %s1817 = sand.u32 %s275, 1
          %s1818 = scalar_lea.sflag [#allocation3], %s1817
          %s1819 = sand.u32 %s275, 1
          %s1820 = smul.addr %s1819, 32
          %s1821 = scalar_lea.vmem [#allocation2], %s1820
          %1822 = dma.done %s1818, 512
        $region76: #{tpu_custom_call.1} parent=71 // pred_fallthru
          _
      $region72: #{tpu_custom_call.1} parent=5 // pred_fallthru
        _
    $region6: #{tpu_custom_call.1} parent=1 // loop_footer
      %s24 = sadd.s32 1, %s20
    $region7: #{tpu_custom_call.1} parent=1 // loop_footer_branch
      %19 = sbr.rel target = $region3
    $region8: #{tpu_custom_call.1} parent=1 // loop_exit
      _
    %1823 = vsyncpa [#allocation3], 1
    %s1824 = scalar_lea.sflag [#allocation3], 1
    %1825 = vsyncpa %s1824, 1

</llo_original>
